<compile_context>
chip_gen: v5e
topology: v5e:2x2
jax: 0.10.0
libtpu: 0.0.40
codegen_flags: <defaults>
</compile_context>

<pallas_src>
import math

import jax
import jax.numpy as jnp
from jax.experimental import pallas as pl
from jax.experimental.pallas import tpu as pltpu


def _round_up(x, m):
    return ((x + m - 1) // m) * m


def _cdiv(a, b):
    return -(-a // b)


# ----------------------------------------------------------------------------
# Kernels: operate on a (TILE_R, ...) row tile, rows = B*T flattened.
# ----------------------------------------------------------------------------
def _pe_kernel(pos_ref, const_ref, out_ref):
    """Sinusoid table only (add_linear=False).

    const_ref is (2, D): row 0 = 1/denom tiled `repeat` times, row 1 = phase
    (pi/2 on odd features) tiled `repeat` times.  cos is folded into the phase
    (cos(x) = sin(x + pi/2)) -> one transcendental per element, and the store
    is a single lane-dense (TILE_R, D) write.
    """
    pos = pos_ref[...]                                     # (TILE_R, 1) f32
    table = jnp.sin(pos * const_ref[0:1, :] + const_ref[1:2, :])   # (TILE_R, D)
    out_ref[...] = table.astype(out_ref.dtype)


def _pe_linear_kernel(pos_ref, const_ref, w_ref, b_ref, out_ref):
    """Sinusoid table + Linear projection (add_linear=True).

    const_ref is (2, d) (un-repeated); `repeat` is pre-folded into the weight
    (W_folded = sum_r W^T[r*d:(r+1)*d, :]) so the MXU LHS is (TILE_R, d).
    """
    pos = pos_ref[...]                                     # (TILE_R, 1) f32
    table = jnp.sin(pos * const_ref[0:1, :] + const_ref[1:2, :])   # (TILE_R, d)
    table = table.astype(w_ref.dtype)
    proj = jnp.dot(table, w_ref[...], preferred_element_type=jnp.float32)
    out_ref[...] = (proj + b_ref[...]).astype(out_ref.dtype)


# ----------------------------------------------------------------------------
# Python-side module
# ----------------------------------------------------------------------------
class PositionalEncoderPallas:
    def __init__(self, d_model, T=1000, repeat=None, offset=0, add_linear=False,
                 key=None, matmul_dtype=jnp.float32, out_dtype=jnp.float32,
                 min_rows_for_pallas=32, max_tile_rows=2048,
                 vmem_budget_bytes=12 * 1024 * 1024):
        self.d = d_model
        self.T = T
        self.repeat = repeat
        self.rep = repeat if repeat is not None else 1
        self.D = d_model * self.rep
        self.add_linear = add_linear
        self.out_dtype = out_dtype
        self.min_rows_for_pallas = min_rows_for_pallas
        self.max_tile_rows = max_tile_rows
        self.vmem_budget_bytes = vmem_budget_bytes   # fits v5e's 16 MiB scoped default

        # denom[i] = T ** (2 * floor((offset + i)/2) / d)   (matches the PyTorch module)
        ar = jnp.arange(offset, offset + d_model, dtype=jnp.float32)
        self.denom = jnp.power(
            jnp.float32(T), 2.0 * jnp.floor(ar / 2.0) / jnp.float32(d_model))
        inv_denom = (1.0 / self.denom)                                 # (d,)
        # Phase trick: cos(x) = sin(x + pi/2) -> single sin per element.
        phase = ((jnp.arange(d_model) % 2).astype(jnp.float32)
                 * jnp.float32(math.pi / 2.0))                         # (d,)
        self.const_d = jnp.stack([inv_denom, phase], axis=0)           # (2, d)
        self.const_D = jnp.tile(self.const_d, (1, self.rep))           # (2, D)

        if add_linear:
            D = self.D
            if key is None:
                key = jax.random.PRNGKey(42)
            kw, kb = jax.random.split(key)
            bound = 1.0 / math.sqrt(D)                  # nn.Linear default init
            W = jax.random.uniform(kw, (D, D), jnp.float32, -bound, bound)  # (out, in)
            b = jax.random.uniform(kb, (D,), jnp.float32, -bound, bound)
            self.w_t = W.T                              # full (D_in, D_out) — ref/fallback
            self.bias = b.reshape(1, D)                 # (1, D) f32
            # Fold repeat: [x, x, ...] @ W^T == x @ sum_r W^T[r*d:(r+1)*d, :]
            w_folded = self.w_t.reshape(self.rep, d_model, D).sum(axis=0)  # (d, D)
            self.w_folded = w_folded.astype(matmul_dtype)

    # ---- tiling plan --------------------------------------------------------
    def _plan(self, rows):
        """Pick (tile_r, grid_n) budgeting ALL double-buffered VMEM consumers."""
        out_row_bytes = self.D * jnp.dtype(self.out_dtype).itemsize
        pos_row_bytes = 4
        if self.add_linear:
            fixed = 2 * (2 * self.d * 4                                    # (2, d) const
                         + self.d * self.D * self.w_folded.dtype.itemsize  # folded W
                         + self.D * 4)                                     # bias
        else:
            fixed = 2 * (2 * self.D * 4)                                   # (2, D) const
        avail = max(self.vmem_budget_bytes - fixed, 64 * 1024)
        per_row = 2 * (out_row_bytes + pos_row_bytes)      # double-buffered out + pos
        max_by_vmem = max(8, avail // per_row)
        cap = max(8, (min(self.max_tile_rows, max_by_vmem) // 8) * 8)

        rows8 = _round_up(rows, 8)
        nblk = _cdiv(rows8, cap)
        if nblk > 1:
            nblk = _round_up(nblk, 2)      # even block count -> balances v7x's 2 TCs
        tile_r = _round_up(_cdiv(rows8, nblk), 8)
        # Never let a single block exceed the row extent (keeps edge blocks as
        # standard masked partial blocks).
        tile_r = min(tile_r, max(8, (rows // 8) * 8))
        grid_n = _cdiv(rows, tile_r)
        return tile_r, grid_n

    # ---- tiny-shape fallback ------------------------------------------------
    def _jax_small(self, pos2d):
        inv_d = self.const_d[0:1, :]
        phase = self.const_d[1:2, :]
        table = jnp.sin(pos2d * inv_d + phase)                          # (rows, d)
        if self.rep > 1:
            table = jnp.tile(table, (1, self.rep))
        if self.add_linear:
            table = jnp.dot(table, self.w_t,
                            preferred_element_type=jnp.float32) + self.bias
        return table.astype(self.out_dtype)

    # ---- forward -------------------------------------------------------------
    def __call__(self, batch_positions):
        B, T = batch_positions.shape
        rows = B * T
        d, D = self.d, self.D
        pos2d = batch_positions.astype(jnp.float32).reshape(rows, 1)

        if rows < self.min_rows_for_pallas:
            return self._jax_small(pos2d).reshape(B, T, D)

        tile_r, grid_n = self._plan(rows)
        grid = (grid_n,)

        # Zero-pad pos so the kernel never evaluates sin() on OOB garbage in a
        # partial last block (output partial block is masked by Pallas anyway).
        rows_pad = tile_r * grid_n
        if rows_pad > rows:
            pos2d = jnp.pad(pos2d, ((0, rows_pad - rows), (0, 0)))

        out_shape = jax.ShapeDtypeStruct((rows, D), self.out_dtype)
        out_spec = pl.BlockSpec((tile_r, D), lambda i: (i, 0))
        pos_spec = pl.BlockSpec((tile_r, 1), lambda i: (i, 0))
        cparams = pltpu.CompilerParams(dimension_semantics=("parallel",))
        out_bytes = rows * D * jnp.dtype(self.out_dtype).itemsize

        if self.add_linear:
            cost = pl.CostEstimate(
                flops=2 * rows * d * D + rows * D + 2 * rows * d,
                transcendentals=rows * d,
                bytes_accessed=(rows * 4 + out_bytes
                                + d * D * self.w_folded.dtype.itemsize
                                + D * 4 + 2 * d * 4),
            )
            out2d = pl.pallas_call(
                _pe_linear_kernel,
                out_shape=out_shape,
                grid=grid,
                in_specs=[
                    pos_spec,
                    pl.BlockSpec((2, d), lambda i: (0, 0)),     # 1/denom + phase (resident)
                    pl.BlockSpec((d, D), lambda i: (0, 0)),     # folded W        (resident)
                    pl.BlockSpec((1, D), lambda i: (0, 0)),     # bias            (resident)
                ],
                out_specs=out_spec,
                compiler_params=cparams,
                cost_estimate=cost,
            )(pos2d, self.const_d, self.w_folded, self.bias)
        else:
            cost = pl.CostEstimate(
                flops=2 * rows * D,
                transcendentals=rows * D,
                bytes_accessed=rows * 4 + out_bytes + 2 * D * 4,
            )
            out2d = pl.pallas_call(
                _pe_kernel,
                out_shape=out_shape,
                grid=grid,
                in_specs=[
                    pos_spec,
                    pl.BlockSpec((2, D), lambda i: (0, 0)),     # tiled 1/denom + phase
                ],
                out_specs=out_spec,
                compiler_params=cparams,
                cost_estimate=cost,
            )(pos2d, self.const_D)

        return out2d.reshape(B, T, D)


# ----------------------------------------------------------------------------
# Pure-JAX reference (mirrors the PyTorch forward exactly: divide, even/odd
# sin/cos select, concat, full Linear).
# ----------------------------------------------------------------------------
def reference_forward(module, batch_positions):
    pos = batch_positions.astype(jnp.float32)
    d = module.d
    table = pos[:, :, None] / module.denom.reshape(1, 1, d)
    idx = jnp.arange(d)
    table = jnp.where((idx % 2 == 0)[None, None, :], jnp.sin(table), jnp.cos(table))
    if module.repeat is not None:
        table = jnp.concatenate([table] * module.repeat, axis=-1)
    if module.add_linear:
        table = table @ module.w_t + module.bias
    return table


# ----------------------------------------------------------------------------
if __name__ == "__main__":
    key = jax.random.PRNGKey(0)
    k_pos, k_params, k_pos2 = jax.random.split(key, 3)

    # --- small but Pallas-path shapes: D = 128 lane-dense ---------------------
    d_model, repeat = 64, 2          # D = 128
    B, T_seq = 2, 64                 # rows = 128
    batch_positions = jax.random.randint(
        k_pos, (B, T_seq), 0, 365).astype(jnp.float32)

    # 1) plain sinusoid table with repeat (add_linear=False)
    enc_plain = PositionalEncoderPallas(d_model, T=1000, repeat=repeat,
                                        offset=0, add_linear=False)
    out_plain = jax.block_until_ready(enc_plain(batch_positions))
    ref_plain = reference_forward(enc_plain, batch_positions)
    assert out_plain.shape == (B, T_seq, d_model * repeat)
    assert jnp.allclose(out_plain, ref_plain, atol=5e-3, rtol=5e-3), (
        float(jnp.max(jnp.abs(out_plain - ref_plain))))

    # 2) Linear projection (f32 MXU matmul by default now)
    enc_lin = PositionalEncoderPallas(d_model, T=1000, repeat=repeat,
                                      offset=0, add_linear=True, key=k_params)
    out_lin = jax.block_until_ready(enc_lin(batch_positions))
    ref_lin = reference_forward(enc_lin, batch_positions)
    assert out_lin.shape == (B, T_seq, d_model * repeat)
    assert jnp.allclose(out_lin, ref_lin, atol=5e-3, rtol=5e-3), (
        float(jnp.max(jnp.abs(out_lin - ref_lin))))

    # 3) ragged multi-block path (rows = 104, two blocks of 56 + 48,
    #    partial last output block masked, pos zero-padded)
    B2, T2 = 2, 52
    ragged_pos = jax.random.randint(
        k_pos2, (B2, T2), 0, 365).astype(jnp.float32)
    enc_ragged = PositionalEncoderPallas(d_model, T=1000, repeat=repeat,
                                         offset=0, add_linear=False,
                                         max_tile_rows=64)
    out_ragged = jax.block_until_ready(enc_ragged(ragged_pos))
    ref_ragged = reference_forward(enc_ragged, ragged_pos)
    assert out_ragged.shape == (B2, T2, d_model * repeat)
    assert jnp.allclose(out_ragged, ref_ragged, atol=5e-3, rtol=5e-3), (
        float(jnp.max(jnp.abs(out_ragged - ref_ragged))))

    # 4) tiny shapes: dispatches to the pure-JAX fallback ----------------------
    B3, T3 = 1, 4
    small_pos = jax.random.randint(k_pos, (B3, T3), 0, 365).astype(jnp.float32)
    enc_small = PositionalEncoderPallas(32, T=1000, repeat=2, offset=0,
                                        add_linear=False)
    out_small = jax.block_until_ready(enc_small(small_pos))
    ref_small = reference_forward(enc_small, small_pos)
    assert out_small.shape == (B3, T3, 64)
    assert jnp.allclose(out_small, ref_small, atol=5e-3, rtol=5e-3)

    print("KERNEL_OK")
</pallas_src>

<mosaic_0001>
module attributes {stable_mosaic.version = 11 : i64} {
  func.func @_pe_kernel(%arg0: i32, %arg1: memref<128x1xf32, #tpu.memory_space<vmem>>, %arg2: memref<2x128xf32, #tpu.memory_space<vmem>>, %arg3: memref<128x128xf32, #tpu.memory_space<vmem>>) attributes {dimension_semantics = [#tpu.dimension_semantics<parallel>], iteration_bounds = array<i64: 1>, scalar_prefetch = 0 : i64, scratch_operands = 0 : i64, tpu.core_type = #tpu.core_type<tc>, window_params = [{transform_indices = @transform_0, window_bounds = array<i64: 128, 1>}, {pipeline_mode = #tpu.pipeline_mode<synchronous>, transform_indices = @transform_1, window_bounds = array<i64: 2, 128>}, {transform_indices = @transform_2, window_bounds = array<i64: 128, 128>}]} {
    %c0 = arith.constant 0 : index
    %c0_0 = arith.constant 0 : index
    %0 = vector.load %arg1[%c0, %c0_0] : memref<128x1xf32, #tpu.memory_space<vmem>>, vector<128x1xf32>
    %c0_1 = arith.constant 0 : index
    %c0_2 = arith.constant 0 : index
    %1 = vector.load %arg2[%c0_1, %c0_2] : memref<2x128xf32, #tpu.memory_space<vmem>>, vector<1x128xf32>
    %2 = vector.broadcast %0 : vector<128x1xf32> to vector<128x128xf32>
    %3 = vector.broadcast %1 : vector<1x128xf32> to vector<128x128xf32>
    %4 = arith.mulf %2, %3 : vector<128x128xf32>
    %c1 = arith.constant 1 : index
    %c0_3 = arith.constant 0 : index
    %5 = vector.load %arg2[%c1, %c0_3] : memref<2x128xf32, #tpu.memory_space<vmem>>, vector<1x128xf32>
    %6 = vector.broadcast %5 : vector<1x128xf32> to vector<128x128xf32>
    %7 = arith.addf %4, %6 : vector<128x128xf32>
    %8 = math.sin %7 : vector<128x128xf32>
    %c0_4 = arith.constant 0 : index
    %c0_5 = arith.constant 0 : index
    %9 = vector.load %arg3[%c0_4, %c0_5] : memref<128x128xf32, #tpu.memory_space<vmem>>, vector<128x128xf32>
    tpu.vector_store %arg3[%c0_4, %c0_5], %8 {strides = array<i32>} : memref<128x128xf32, #tpu.memory_space<vmem>>, vector<128x128xf32>,
    return
  }
  func.func @transform_0(%arg0: i32) -> (i32, i32) {
    %c0_i32 = arith.constant 0 : i32
    %c0_i32_0 = arith.constant 0 : i32
    return %arg0, %c0_i32 : i32, i32
  }
  func.func @transform_1(%arg0: i32) -> (i32, i32) {
    %c0_i32 = arith.constant 0 : i32
    %c0_i32_0 = arith.constant 0 : i32
    %c0_i32_1 = arith.constant 0 : i32
    return %c0_i32, %c0_i32_0 : i32, i32
  }
  func.func @transform_2(%arg0: i32) -> (i32, i32) {
    %c0_i32 = arith.constant 0 : i32
    %c0_i32_0 = arith.constant 0 : i32
    return %arg0, %c0_i32 : i32, i32
  }
}

</mosaic_0001>

<llo_original>
// kernel: tpu_custom_call.1
$region0: #{tpu_custom_call.1}
  #allocation0 [shape = 'u32[]', space=smem, size = 0x4, offset = 0x4, fixed_abs, tag = 'smem constant byte address 0x4 - core index']
  #allocation1 [shape = 'u32[72,128]{1,0:T(1,128)}', space=vmem, size = 0x9000, scoped, tag = 'internal scratch']
  %s0 = inlined_call_operand.vmem [shape: f32[128,1], index: 0, kind: input, shape index: {}]
  %s1 = inlined_call_operand.vmem [shape: f32[2,128], index: 1, kind: input, shape index: {}]
  %s2 = inlined_call_operand.hbm [shape: f32[128,128], index: 2, kind: output, shape index: {}]
  %s3 = sld [smem:[#allocation0]]
  $region18: #{tpu_custom_call.1} parent=0
    _
  %s5 = ssub.s32 1, %s3
  %s6 = scalar_select 0, %s5, %s3
  $region1: #{tpu_custom_call.1} parent=0
    #allocation2 [shape = 'u8[65536]{0}', space=vmem, size = 0x10000, scoped, tag = 'output window, operand 0, single buffered']
    #allocation3 [shape = 's32[1]{0}', space=sflag, size = 0x4, scoped, tag = 'scoped memory for tpu_custom_call.1']
    %7 = vsyncpa [#allocation3], 0
    // Predicated region
    $region2: #{tpu_custom_call.1} parent=1 // pred_check
      _
    $region3: #{tpu_custom_call.1} parent=1 // pred_check_branch
      %9 = sbr.rel (0) target = $region5
    $region4: #{tpu_custom_call.1} parent=1 // pred_region
      _
    $region5: #{tpu_custom_call.1} parent=1 // pred_fallthru
      _
    // Predicated region
    $region6: #{tpu_custom_call.1} parent=1 // pred_check
      _
    $region7: #{tpu_custom_call.1} parent=1 // pred_check_branch
      %11 = sbr.rel (0) target = $region9
    $region8: #{tpu_custom_call.1} parent=1 // pred_region
      _
    $region9: #{tpu_custom_call.1} parent=1 // pred_fallthru
      _
    %v12 = vld [vmem:[%s0] sm:$0xff]
    %v13 = vld [vmem:[%s0 + $0x8] sm:$0xff]
    %v14 = vld [vmem:[%s0 + $0x10] sm:$0xff]
    %v15 = vld [vmem:[%s0 + $0x18] sm:$0xff]
    %v16 = vld [vmem:[%s0 + $0x20] sm:$0xff]
    %v17 = vld [vmem:[%s0 + $0x28] sm:$0xff]
    %v18 = vld [vmem:[%s0 + $0x30] sm:$0xff]
    %v19 = vld [vmem:[%s0 + $0x38] sm:$0xff]
    %v20 = vld [vmem:[%s0 + $0x40] sm:$0xff]
    %v21 = vld [vmem:[%s0 + $0x48] sm:$0xff]
    %v22 = vld [vmem:[%s0 + $0x50] sm:$0xff]
    %v23 = vld [vmem:[%s0 + $0x58] sm:$0xff]
    %v24 = vld [vmem:[%s0 + $0x60] sm:$0xff]
    %v25 = vld [vmem:[%s0 + $0x68] sm:$0xff]
    %v26 = vld [vmem:[%s0 + $0x70] sm:$0xff]
    %v27 = vld [vmem:[%s0 + $0x78] sm:$0xff]
    %v28 = vld [vmem:[%s1] sm:$0x1]
    %30 = vset.pattern.permute.xlu0 0
    %31 = vperm.xlu0 %30, %v12
    %v32 = vpop.permute.xlu0 %31
    %35 = vset.pattern.permute.xlu0 0
    %36 = vperm.xlu0 %35, %v13
    %v37 = vpop.permute.xlu0 %36
    %40 = vset.pattern.permute.xlu0 0
    %41 = vperm.xlu0 %40, %v14
    %v42 = vpop.permute.xlu0 %41
    %45 = vset.pattern.permute.xlu0 0
    %46 = vperm.xlu0 %45, %v15
    %v47 = vpop.permute.xlu0 %46
    %50 = vset.pattern.permute.xlu0 0
    %51 = vperm.xlu0 %50, %v16
    %v52 = vpop.permute.xlu0 %51
    %55 = vset.pattern.permute.xlu0 0
    %56 = vperm.xlu0 %55, %v17
    %v57 = vpop.permute.xlu0 %56
    %60 = vset.pattern.permute.xlu0 0
    %61 = vperm.xlu0 %60, %v18
    %v62 = vpop.permute.xlu0 %61
    %65 = vset.pattern.permute.xlu0 0
    %66 = vperm.xlu0 %65, %v19
    %v67 = vpop.permute.xlu0 %66
    %70 = vset.pattern.permute.xlu0 0
    %71 = vperm.xlu0 %70, %v20
    %v72 = vpop.permute.xlu0 %71
    %75 = vset.pattern.permute.xlu0 0
    %76 = vperm.xlu0 %75, %v21
    %v77 = vpop.permute.xlu0 %76
    %80 = vset.pattern.permute.xlu0 0
    %81 = vperm.xlu0 %80, %v22
    %v82 = vpop.permute.xlu0 %81
    %85 = vset.pattern.permute.xlu0 0
    %86 = vperm.xlu0 %85, %v23
    %v87 = vpop.permute.xlu0 %86
    %90 = vset.pattern.permute.xlu0 0
    %91 = vperm.xlu0 %90, %v24
    %v92 = vpop.permute.xlu0 %91
    %95 = vset.pattern.permute.xlu0 0
    %96 = vperm.xlu0 %95, %v25
    %v97 = vpop.permute.xlu0 %96
    %100 = vset.pattern.permute.xlu0 0
    %101 = vperm.xlu0 %100, %v26
    %v102 = vpop.permute.xlu0 %101
    %105 = vset.pattern.permute.xlu0 0
    %106 = vperm.xlu0 %105, %v27
    %v107 = vpop.permute.xlu0 %106
    %v109 = vperm.slane %v28, 0
    %v110 = vmul.f32 %v32, %v109
    %v111 = vmul.f32 %v37, %v109
    %v112 = vmul.f32 %v42, %v109
    %v113 = vmul.f32 %v47, %v109
    %v114 = vmul.f32 %v52, %v109
    %v115 = vmul.f32 %v57, %v109
    %v116 = vmul.f32 %v62, %v109
    %v117 = vmul.f32 %v67, %v109
    %v118 = vmul.f32 %v72, %v109
    %v119 = vmul.f32 %v77, %v109
    %v120 = vmul.f32 %v82, %v109
    %v121 = vmul.f32 %v87, %v109
    %v122 = vmul.f32 %v92, %v109
    %v123 = vmul.f32 %v97, %v109
    %v124 = vmul.f32 %v102, %v109
    %v125 = vmul.f32 %v107, %v109
    %v126 = vld [vmem:[%s1 + $0x1] sm:$0x1]
    %v127 = vperm.slane %v126, 0
    %v128 = vadd.f32 %v110, %v127
    %v129 = vadd.f32 %v111, %v127
    %v130 = vadd.f32 %v112, %v127
    %v131 = vadd.f32 %v113, %v127
    %v132 = vadd.f32 %v114, %v127
    %v133 = vadd.f32 %v115, %v127
    %v134 = vadd.f32 %v116, %v127
    %v135 = vadd.f32 %v117, %v127
    %v136 = vadd.f32 %v118, %v127
    %v137 = vadd.f32 %v119, %v127
    %v138 = vadd.f32 %v120, %v127
    %v139 = vadd.f32 %v121, %v127
    %v140 = vadd.f32 %v122, %v127
    %v141 = vadd.f32 %v123, %v127
    %v142 = vadd.f32 %v124, %v127
    %v143 = vadd.f32 %v125, %v127
    %v144 = vand.u32 2147483647, %v128
    %vm145 = vcmp.le.f32.partialorder %v144, 0.7853982
    %vm146 = vcmp.lt.s32.totalorder %v128, 0
    %v147 = vand.u32 %v128, 2139095040
    %v148 = vshrl.u32 %v147, 23
    %v149 = vsub.s32 %v148, 127
    %v150 = vand.u32 2147483647, %v128
    %v151 = vand.u32 %v150, 8388607
    %v152 = vor.u32 %v151, 8388608
    %v153 = vsub.s32 0, %v152
    %v154 = vadd.s32 %v149, 1
    %vm155 = vcmp.gt.s32.totalorder %v154, 0
    %v156 = vsel %vm155, %v154, 0
    %v157 = vshrl.u32 %v156, 5
    %v158 = vand.u32 %v156, 31
    %v159 = vsub.s32 32, %v158
    %v160 = vshrl.u32 683565275, %v159
    %v161 = vshll.u32 683565275, %v158
    %v162 = vshrl.u32 2475754826, %v159
    %v163 = vor.u32 %v161, %v162
    %v164 = vshll.u32 2475754826, %v158
    %v165 = vshrl.u32 2131351028, %v159
    %v166 = vor.u32 %v164, %v165
    %v167 = vshll.u32 2131351028, %v158
    %v168 = vshrl.u32 2102212464, %v159
    %v169 = vor.u32 %v167, %v168
    %v170 = vshll.u32 2102212464, %v158
    %v171 = vshrl.u32 920167782, %v159
    %v172 = vor.u32 %v170, %v171
    %v173 = vshll.u32 920167782, %v158
    %v174 = vshrl.u32 1326507024, %v159
    %v175 = vor.u32 %v173, %v174
    %vm176 = vcmp.lt.s32.totalorder %v157, 1
    %vm177 = vcmp.lt.s32.totalorder %v157, 2
    %vm178 = vcmp.lt.s32.totalorder %v157, 3
    %vm179 = vcmp.lt.s32.totalorder %v157, 4
    %v180 = vsel %vm176, %v160, %v163
    %v181 = vsel %vm179, %v169, 2102212464
    %v182 = vsel %vm178, %v166, %v181
    %v183 = vsel %vm177, %v180, %v182
    %v184 = vsel %vm176, %v163, %v166
    %v185 = vsel %vm179, %v172, 920167782
    %v186 = vsel %vm178, %v169, %v185
    %v187 = vsel %vm177, %v184, %v186
    %v188 = vsel %vm176, %v166, %v169
    %v189 = vsel %vm179, %v175, 1326507024
    %v190 = vsel %vm178, %v172, %v189
    %v191 = vsel %vm177, %v188, %v190
    %v192 = vshll.u32 %v152, 8
    %v193 = vand.u32 %v192, 65535
    %v194 = vshrl.u32 %v192, 16
    %v195 = vand.u32 %v191, 65535
    %v196 = vshrl.u32 %v191, 16
    %v197 = vmul.u32 %v193, %v195
    %v198 = vmul.u32 %v193, %v196
    %v199 = vmul.u32 %v194, %v195
    %v200 = vmul.u32 %v194, %v196
    %v201 = vshll.u32 %v198, 16
    %v202 = vshrl.u32 %v198, 16
    %v203 = vshll.u32 %v199, 16
    %v204 = vshrl.u32 %v199, 16
    %vm205 = vc.u32 %v197, %v201
    %v206 = vsel %vm205, 1, 0
    %v207 = vadd.s32 %v197, %v201
    %v208 = vadd.s32 %v200, %v206
    %vm209 = vc.u32 %v207, %v203
    %v210 = vsel %vm209, 1, 0
    %v211 = vadd.s32 %v207, %v203
    %v212 = vadd.s32 %v208, %v210
    %v213 = vadd.s32 %v212, %v202
    %v214 = vadd.s32 %v213, %v204
    %v215 = vand.u32 %v192, 65535
    %v216 = vshrl.u32 %v192, 16
    %v217 = vand.u32 %v187, 65535
    %v218 = vshrl.u32 %v187, 16
    %v219 = vmul.u32 %v215, %v217
    %v220 = vmul.u32 %v215, %v218
    %v221 = vmul.u32 %v216, %v217
    %v222 = vmul.u32 %v216, %v218
    %v223 = vshll.u32 %v220, 16
    %v224 = vshrl.u32 %v220, 16
    %v225 = vshll.u32 %v221, 16
    %v226 = vshrl.u32 %v221, 16
    %vm227 = vc.u32 %v219, %v223
    %v228 = vsel %vm227, 1, 0
    %v229 = vadd.s32 %v219, %v223
    %v230 = vadd.s32 %v222, %v228
    %vm231 = vc.u32 %v229, %v225
    %v232 = vsel %vm231, 1, 0
    %v233 = vadd.s32 %v229, %v225
    %v234 = vadd.s32 %v230, %v232
    %v235 = vadd.s32 %v234, %v224
    %v236 = vadd.s32 %v235, %v226
    %v237 = vmul.u32 %v192, %v183
    %v238 = vadd.s32 %v214, %v233
    %vm239 = vc.u32 %v214, %v233
    %v240 = vadd.s32 %v236, 1
    %v241 = vsel %vm239, %v240, %v236
    %v242 = vadd.s32 %v237, %v241
    %v243 = vadd.s32 %v242, 536870912
    %v244 = vshrl.u32 %v243, 30
    %v245 = vshll.u32 %v244, 30
    %v246 = vsub.s32 %v242, %v245
    %vm247 = vcmp.lt.s32.totalorder %v246, 0
    %v248 = vsub.s32 0, %v246
    %v249 = vsel %vm247, %v248, %v246
    %v250 = vclz %v249
    %v251 = vsub.s32 %v250, 2
    %vm252 = vcmp.gt.s32.totalorder 0, %v251
    %v253 = vsel %vm252, 0, %v251
    %v254 = vsub.s32 32, %v253
    %v255 = vshll.u32 %v246, %v253
    %v256 = vshrl.u32 %v238, %v254
    %v257 = vor.u32 %v255, %v256
    %v258 = vsub.s32 4294967266, %v253
    %v259 = vadd.s32 %v258, 127
    %v260 = vshll.u32 %v259, 23
    %v261 = vor.u32 4788187, %v260
    %v262 = vand.u32 2147483647, %v261
    %v264 = vcvt.s32.f32 %v257
    %v265 = vmul.f32 %v264, %v262
    %v266 = vxor.u32 %v265, 2147483648
    %v267 = vsel %vm146, %v266, %v265
    %v268 = vsub.s32 4, %v244
    %v269 = vsel %vm146, %v268, %v244
    %v270 = vsel %vm145, %v128, %v267
    %v271 = vsel %vm145, 0, %v269
    %v272 = vmul.f32 %v270, %v270
    %v273 = vmul.f32 %v272, -0.001358992
    %v274 = vadd.f32 %v273, 0.041655596
    %v275 = vmul.f32 %v272, %v274
    %v276 = vadd.f32 %v275, -0.4999988
    %v277 = vmul.f32 %v272, %v276
    %v278 = vadd.f32 1.0, %v277
    %v279 = vmul.f32 %v270, %v270
    %v280 = vmul.f32 %v279, -0.00019511016
    %v281 = vadd.f32 %v280, 0.008332121
    %v282 = vmul.f32 %v279, %v281
    %v283 = vadd.f32 %v282, -0.16666654
    %v284 = vmul.f32 %v279, %v283
    %v285 = vadd.f32 %v284, 1.0
    %v286 = vmul.f32 %v285, %v270
    %vm287 = vweird.f32 %v128
    %v288 = vadd.s32 %v271, 3
    %v289 = vand.u32 %v288, 3
    %vm290 = vcmp.lt.s32.totalorder %v289, 2
    %vm291 = vcmp.eq.s32.totalorder %v289, 0
    %v292 = vxor.u32 %v286, 2147483648
    %v293 = vsel %vm291, %v278, %v292
    %vm294 = vcmp.eq.s32.totalorder %v289, 2
    %v295 = vxor.u32 %v278, 2147483648
    %v296 = vsel %vm294, %v295, %v286
    %v297 = vsel %vm290, %v293, %v296
    %v298 = vsel %vm287, nan, %v297
    %v299 = vand.u32 2147483647, %v129
    %vm300 = vcmp.le.f32.partialorder %v299, 0.7853982
    %vm301 = vcmp.lt.s32.totalorder %v129, 0
    %v302 = vand.u32 %v129, 2139095040
    %v303 = vshrl.u32 %v302, 23
    %v304 = vsub.s32 %v303, 127
    %v305 = vand.u32 2147483647, %v129
    %v306 = vand.u32 %v305, 8388607
    %v307 = vor.u32 %v306, 8388608
    %v308 = vsub.s32 0, %v307
    %v309 = vadd.s32 %v304, 1
    %vm310 = vcmp.gt.s32.totalorder %v309, 0
    %v311 = vsel %vm310, %v309, 0
    %v312 = vshrl.u32 %v311, 5
    %v313 = vand.u32 %v311, 31
    %v314 = vsub.s32 32, %v313
    %v315 = vshrl.u32 683565275, %v314
    %v316 = vshll.u32 683565275, %v313
    %v317 = vshrl.u32 2475754826, %v314
    %v318 = vor.u32 %v316, %v317
    %v319 = vshll.u32 2475754826, %v313
    %v320 = vshrl.u32 2131351028, %v314
    %v321 = vor.u32 %v319, %v320
    %v322 = vshll.u32 2131351028, %v313
    %v323 = vshrl.u32 2102212464, %v314
    %v324 = vor.u32 %v322, %v323
    %v325 = vshll.u32 2102212464, %v313
    %v326 = vshrl.u32 920167782, %v314
    %v327 = vor.u32 %v325, %v326
    %v328 = vshll.u32 920167782, %v313
    %v329 = vshrl.u32 1326507024, %v314
    %v330 = vor.u32 %v328, %v329
    %vm331 = vcmp.lt.s32.totalorder %v312, 1
    %vm332 = vcmp.lt.s32.totalorder %v312, 2
    %vm333 = vcmp.lt.s32.totalorder %v312, 3
    %vm334 = vcmp.lt.s32.totalorder %v312, 4
    %v335 = vsel %vm331, %v315, %v318
    %v336 = vsel %vm334, %v324, 2102212464
    %v337 = vsel %vm333, %v321, %v336
    %v338 = vsel %vm332, %v335, %v337
    %v339 = vsel %vm331, %v318, %v321
    %v340 = vsel %vm334, %v327, 920167782
    %v341 = vsel %vm333, %v324, %v340
    %v342 = vsel %vm332, %v339, %v341
    %v343 = vsel %vm331, %v321, %v324
    %v344 = vsel %vm334, %v330, 1326507024
    %v345 = vsel %vm333, %v327, %v344
    %v346 = vsel %vm332, %v343, %v345
    %v347 = vshll.u32 %v307, 8
    %v348 = vand.u32 %v347, 65535
    %v349 = vshrl.u32 %v347, 16
    %v350 = vand.u32 %v346, 65535
    %v351 = vshrl.u32 %v346, 16
    %v352 = vmul.u32 %v348, %v350
    %v353 = vmul.u32 %v348, %v351
    %v354 = vmul.u32 %v349, %v350
    %v355 = vmul.u32 %v349, %v351
    %v356 = vshll.u32 %v353, 16
    %v357 = vshrl.u32 %v353, 16
    %v358 = vshll.u32 %v354, 16
    %v359 = vshrl.u32 %v354, 16
    %vm360 = vc.u32 %v352, %v356
    %v361 = vsel %vm360, 1, 0
    %v362 = vadd.s32 %v352, %v356
    %v363 = vadd.s32 %v355, %v361
    %vm364 = vc.u32 %v362, %v358
    %v365 = vsel %vm364, 1, 0
    %v366 = vadd.s32 %v362, %v358
    %v367 = vadd.s32 %v363, %v365
    %v368 = vadd.s32 %v367, %v357
    %v369 = vadd.s32 %v368, %v359
    %v370 = vand.u32 %v347, 65535
    %v371 = vshrl.u32 %v347, 16
    %v372 = vand.u32 %v342, 65535
    %v373 = vshrl.u32 %v342, 16
    %v374 = vmul.u32 %v370, %v372
    %v375 = vmul.u32 %v370, %v373
    %v376 = vmul.u32 %v371, %v372
    %v377 = vmul.u32 %v371, %v373
    %v378 = vshll.u32 %v375, 16
    %v379 = vshrl.u32 %v375, 16
    %v380 = vshll.u32 %v376, 16
    %v381 = vshrl.u32 %v376, 16
    %vm382 = vc.u32 %v374, %v378
    %v383 = vsel %vm382, 1, 0
    %v384 = vadd.s32 %v374, %v378
    %v385 = vadd.s32 %v377, %v383
    %vm386 = vc.u32 %v384, %v380
    %v387 = vsel %vm386, 1, 0
    %v388 = vadd.s32 %v384, %v380
    %v389 = vadd.s32 %v385, %v387
    %v390 = vadd.s32 %v389, %v379
    %v391 = vadd.s32 %v390, %v381
    %v392 = vmul.u32 %v347, %v338
    %v393 = vadd.s32 %v369, %v388
    %vm394 = vc.u32 %v369, %v388
    %v395 = vadd.s32 %v391, 1
    %v396 = vsel %vm394, %v395, %v391
    %v397 = vadd.s32 %v392, %v396
    %v398 = vadd.s32 %v397, 536870912
    %v399 = vshrl.u32 %v398, 30
    %v400 = vshll.u32 %v399, 30
    %v401 = vsub.s32 %v397, %v400
    %vm402 = vcmp.lt.s32.totalorder %v401, 0
    %v403 = vsub.s32 0, %v401
    %v404 = vsel %vm402, %v403, %v401
    %v405 = vclz %v404
    %v406 = vsub.s32 %v405, 2
    %vm407 = vcmp.gt.s32.totalorder 0, %v406
    %v408 = vsel %vm407, 0, %v406
    %v409 = vsub.s32 32, %v408
    %v410 = vshll.u32 %v401, %v408
    %v411 = vshrl.u32 %v393, %v409
    %v412 = vor.u32 %v410, %v411
    %v413 = vsub.s32 4294967266, %v408
    %v414 = vadd.s32 %v413, 127
    %v415 = vshll.u32 %v414, 23
    %v416 = vor.u32 4788187, %v415
    %v417 = vand.u32 2147483647, %v416
    %v419 = vcvt.s32.f32 %v412
    %v420 = vmul.f32 %v419, %v417
    %v421 = vxor.u32 %v420, 2147483648
    %v422 = vsel %vm301, %v421, %v420
    %v423 = vsub.s32 4, %v399
    %v424 = vsel %vm301, %v423, %v399
    %v425 = vsel %vm300, %v129, %v422
    %v426 = vsel %vm300, 0, %v424
    %v427 = vmul.f32 %v425, %v425
    %v428 = vmul.f32 %v427, -0.001358992
    %v429 = vadd.f32 %v428, 0.041655596
    %v430 = vmul.f32 %v427, %v429
    %v431 = vadd.f32 %v430, -0.4999988
    %v432 = vmul.f32 %v427, %v431
    %v433 = vadd.f32 1.0, %v432
    %v434 = vmul.f32 %v425, %v425
    %v435 = vmul.f32 %v434, -0.00019511016
    %v436 = vadd.f32 %v435, 0.008332121
    %v437 = vmul.f32 %v434, %v436
    %v438 = vadd.f32 %v437, -0.16666654
    %v439 = vmul.f32 %v434, %v438
    %v440 = vadd.f32 %v439, 1.0
    %v441 = vmul.f32 %v440, %v425
    %vm442 = vweird.f32 %v129
    %v443 = vadd.s32 %v426, 3
    %v444 = vand.u32 %v443, 3
    %vm445 = vcmp.lt.s32.totalorder %v444, 2
    %vm446 = vcmp.eq.s32.totalorder %v444, 0
    %v447 = vxor.u32 %v441, 2147483648
    %v448 = vsel %vm446, %v433, %v447
    %vm449 = vcmp.eq.s32.totalorder %v444, 2
    %v450 = vxor.u32 %v433, 2147483648
    %v451 = vsel %vm449, %v450, %v441
    %v452 = vsel %vm445, %v448, %v451
    %v453 = vsel %vm442, nan, %v452
    %v454 = vand.u32 2147483647, %v130
    %vm455 = vcmp.le.f32.partialorder %v454, 0.7853982
    %vm456 = vcmp.lt.s32.totalorder %v130, 0
    %v457 = vand.u32 %v130, 2139095040
    %v458 = vshrl.u32 %v457, 23
    %v459 = vsub.s32 %v458, 127
    %v460 = vand.u32 2147483647, %v130
    %v461 = vand.u32 %v460, 8388607
    %v462 = vor.u32 %v461, 8388608
    %v463 = vsub.s32 0, %v462
    %v464 = vadd.s32 %v459, 1
    %vm465 = vcmp.gt.s32.totalorder %v464, 0
    %v466 = vsel %vm465, %v464, 0
    %v467 = vshrl.u32 %v466, 5
    %v468 = vand.u32 %v466, 31
    %v469 = vsub.s32 32, %v468
    %v470 = vshrl.u32 683565275, %v469
    %v471 = vshll.u32 683565275, %v468
    %v472 = vshrl.u32 2475754826, %v469
    %v473 = vor.u32 %v471, %v472
    %v474 = vshll.u32 2475754826, %v468
    %v475 = vshrl.u32 2131351028, %v469
    %v476 = vor.u32 %v474, %v475
    %v477 = vshll.u32 2131351028, %v468
    %v478 = vshrl.u32 2102212464, %v469
    %v479 = vor.u32 %v477, %v478
    %v480 = vshll.u32 2102212464, %v468
    %v481 = vshrl.u32 920167782, %v469
    %v482 = vor.u32 %v480, %v481
    %v483 = vshll.u32 920167782, %v468
    %v484 = vshrl.u32 1326507024, %v469
    %v485 = vor.u32 %v483, %v484
    %vm486 = vcmp.lt.s32.totalorder %v467, 1
    %vm487 = vcmp.lt.s32.totalorder %v467, 2
    %vm488 = vcmp.lt.s32.totalorder %v467, 3
    %vm489 = vcmp.lt.s32.totalorder %v467, 4
    %v490 = vsel %vm486, %v470, %v473
    %v491 = vsel %vm489, %v479, 2102212464
    %v492 = vsel %vm488, %v476, %v491
    %v493 = vsel %vm487, %v490, %v492
    %v494 = vsel %vm486, %v473, %v476
    %v495 = vsel %vm489, %v482, 920167782
    %v496 = vsel %vm488, %v479, %v495
    %v497 = vsel %vm487, %v494, %v496
    %v498 = vsel %vm486, %v476, %v479
    %v499 = vsel %vm489, %v485, 1326507024
    %v500 = vsel %vm488, %v482, %v499
    %v501 = vsel %vm487, %v498, %v500
    %v502 = vshll.u32 %v462, 8
    %v503 = vand.u32 %v502, 65535
    %v504 = vshrl.u32 %v502, 16
    %v505 = vand.u32 %v501, 65535
    %v506 = vshrl.u32 %v501, 16
    %v507 = vmul.u32 %v503, %v505
    %v508 = vmul.u32 %v503, %v506
    %v509 = vmul.u32 %v504, %v505
    %v510 = vmul.u32 %v504, %v506
    %v511 = vshll.u32 %v508, 16
    %v512 = vshrl.u32 %v508, 16
    %v513 = vshll.u32 %v509, 16
    %v514 = vshrl.u32 %v509, 16
    %vm515 = vc.u32 %v507, %v511
    %v516 = vsel %vm515, 1, 0
    %v517 = vadd.s32 %v507, %v511
    %v518 = vadd.s32 %v510, %v516
    %vm519 = vc.u32 %v517, %v513
    %v520 = vsel %vm519, 1, 0
    %v521 = vadd.s32 %v517, %v513
    %v522 = vadd.s32 %v518, %v520
    %v523 = vadd.s32 %v522, %v512
    %v524 = vadd.s32 %v523, %v514
    %v525 = vand.u32 %v502, 65535
    %v526 = vshrl.u32 %v502, 16
    %v527 = vand.u32 %v497, 65535
    %v528 = vshrl.u32 %v497, 16
    %v529 = vmul.u32 %v525, %v527
    %v530 = vmul.u32 %v525, %v528
    %v531 = vmul.u32 %v526, %v527
    %v532 = vmul.u32 %v526, %v528
    %v533 = vshll.u32 %v530, 16
    %v534 = vshrl.u32 %v530, 16
    %v535 = vshll.u32 %v531, 16
    %v536 = vshrl.u32 %v531, 16
    %vm537 = vc.u32 %v529, %v533
    %v538 = vsel %vm537, 1, 0
    %v539 = vadd.s32 %v529, %v533
    %v540 = vadd.s32 %v532, %v538
    %vm541 = vc.u32 %v539, %v535
    %v542 = vsel %vm541, 1, 0
    %v543 = vadd.s32 %v539, %v535
    %v544 = vadd.s32 %v540, %v542
    %v545 = vadd.s32 %v544, %v534
    %v546 = vadd.s32 %v545, %v536
    %v547 = vmul.u32 %v502, %v493
    %v548 = vadd.s32 %v524, %v543
    %vm549 = vc.u32 %v524, %v543
    %v550 = vadd.s32 %v546, 1
    %v551 = vsel %vm549, %v550, %v546
    %v552 = vadd.s32 %v547, %v551
    %v553 = vadd.s32 %v552, 536870912
    %v554 = vshrl.u32 %v553, 30
    %v555 = vshll.u32 %v554, 30
    %v556 = vsub.s32 %v552, %v555
    %vm557 = vcmp.lt.s32.totalorder %v556, 0
    %v558 = vsub.s32 0, %v556
    %v559 = vsel %vm557, %v558, %v556
    %v560 = vclz %v559
    %v561 = vsub.s32 %v560, 2
    %vm562 = vcmp.gt.s32.totalorder 0, %v561
    %v563 = vsel %vm562, 0, %v561
    %v564 = vsub.s32 32, %v563
    %v565 = vshll.u32 %v556, %v563
    %v566 = vshrl.u32 %v548, %v564
    %v567 = vor.u32 %v565, %v566
    %v568 = vsub.s32 4294967266, %v563
    %v569 = vadd.s32 %v568, 127
    %v570 = vshll.u32 %v569, 23
    %v571 = vor.u32 4788187, %v570
    %v572 = vand.u32 2147483647, %v571
    %v574 = vcvt.s32.f32 %v567
    %v575 = vmul.f32 %v574, %v572
    %v576 = vxor.u32 %v575, 2147483648
    %v577 = vsel %vm456, %v576, %v575
    %v578 = vsub.s32 4, %v554
    %v579 = vsel %vm456, %v578, %v554
    %v580 = vsel %vm455, %v130, %v577
    %v581 = vsel %vm455, 0, %v579
    %v582 = vmul.f32 %v580, %v580
    %v583 = vmul.f32 %v582, -0.001358992
    %v584 = vadd.f32 %v583, 0.041655596
    %v585 = vmul.f32 %v582, %v584
    %v586 = vadd.f32 %v585, -0.4999988
    %v587 = vmul.f32 %v582, %v586
    %v588 = vadd.f32 1.0, %v587
    %v589 = vmul.f32 %v580, %v580
    %v590 = vmul.f32 %v589, -0.00019511016
    %v591 = vadd.f32 %v590, 0.008332121
    %v592 = vmul.f32 %v589, %v591
    %v593 = vadd.f32 %v592, -0.16666654
    %v594 = vmul.f32 %v589, %v593
    %v595 = vadd.f32 %v594, 1.0
    %v596 = vmul.f32 %v595, %v580
    %vm597 = vweird.f32 %v130
    %v598 = vadd.s32 %v581, 3
    %v599 = vand.u32 %v598, 3
    %vm600 = vcmp.lt.s32.totalorder %v599, 2
    %vm601 = vcmp.eq.s32.totalorder %v599, 0
    %v602 = vxor.u32 %v596, 2147483648
    %v603 = vsel %vm601, %v588, %v602
    %vm604 = vcmp.eq.s32.totalorder %v599, 2
    %v605 = vxor.u32 %v588, 2147483648
    %v606 = vsel %vm604, %v605, %v596
    %v607 = vsel %vm600, %v603, %v606
    %v608 = vsel %vm597, nan, %v607
    %v609 = vand.u32 2147483647, %v131
    %vm610 = vcmp.le.f32.partialorder %v609, 0.7853982
    %vm611 = vcmp.lt.s32.totalorder %v131, 0
    %v612 = vand.u32 %v131, 2139095040
    %v613 = vshrl.u32 %v612, 23
    %v614 = vsub.s32 %v613, 127
    %v615 = vand.u32 2147483647, %v131
    %v616 = vand.u32 %v615, 8388607
    %v617 = vor.u32 %v616, 8388608
    %v618 = vsub.s32 0, %v617
    %v619 = vadd.s32 %v614, 1
    %vm620 = vcmp.gt.s32.totalorder %v619, 0
    %v621 = vsel %vm620, %v619, 0
    %v622 = vshrl.u32 %v621, 5
    %v623 = vand.u32 %v621, 31
    %v624 = vsub.s32 32, %v623
    %v625 = vshrl.u32 683565275, %v624
    %v626 = vshll.u32 683565275, %v623
    %v627 = vshrl.u32 2475754826, %v624
    %v628 = vor.u32 %v626, %v627
    %v629 = vshll.u32 2475754826, %v623
    %v630 = vshrl.u32 2131351028, %v624
    %v631 = vor.u32 %v629, %v630
    %v632 = vshll.u32 2131351028, %v623
    %v633 = vshrl.u32 2102212464, %v624
    %v634 = vor.u32 %v632, %v633
    %v635 = vshll.u32 2102212464, %v623
    %v636 = vshrl.u32 920167782, %v624
    %v637 = vor.u32 %v635, %v636
    %v638 = vshll.u32 920167782, %v623
    %v639 = vshrl.u32 1326507024, %v624
    %v640 = vor.u32 %v638, %v639
    %vm641 = vcmp.lt.s32.totalorder %v622, 1
    %vm642 = vcmp.lt.s32.totalorder %v622, 2
    %vm643 = vcmp.lt.s32.totalorder %v622, 3
    %vm644 = vcmp.lt.s32.totalorder %v622, 4
    %v645 = vsel %vm641, %v625, %v628
    %v646 = vsel %vm644, %v634, 2102212464
    %v647 = vsel %vm643, %v631, %v646
    %v648 = vsel %vm642, %v645, %v647
    %v649 = vsel %vm641, %v628, %v631
    %v650 = vsel %vm644, %v637, 920167782
    %v651 = vsel %vm643, %v634, %v650
    %v652 = vsel %vm642, %v649, %v651
    %v653 = vsel %vm641, %v631, %v634
    %v654 = vsel %vm644, %v640, 1326507024
    %v655 = vsel %vm643, %v637, %v654
    %v656 = vsel %vm642, %v653, %v655
    %v657 = vshll.u32 %v617, 8
    %v658 = vand.u32 %v657, 65535
    %v659 = vshrl.u32 %v657, 16
    %v660 = vand.u32 %v656, 65535
    %v661 = vshrl.u32 %v656, 16
    %v662 = vmul.u32 %v658, %v660
    %v663 = vmul.u32 %v658, %v661
    %v664 = vmul.u32 %v659, %v660
    %v665 = vmul.u32 %v659, %v661
    %v666 = vshll.u32 %v663, 16
    %v667 = vshrl.u32 %v663, 16
    %v668 = vshll.u32 %v664, 16
    %v669 = vshrl.u32 %v664, 16
    %vm670 = vc.u32 %v662, %v666
    %v671 = vsel %vm670, 1, 0
    %v672 = vadd.s32 %v662, %v666
    %v673 = vadd.s32 %v665, %v671
    %vm674 = vc.u32 %v672, %v668
    %v675 = vsel %vm674, 1, 0
    %v676 = vadd.s32 %v672, %v668
    %v677 = vadd.s32 %v673, %v675
    %v678 = vadd.s32 %v677, %v667
    %v679 = vadd.s32 %v678, %v669
    %v680 = vand.u32 %v657, 65535
    %v681 = vshrl.u32 %v657, 16
    %v682 = vand.u32 %v652, 65535
    %v683 = vshrl.u32 %v652, 16
    %v684 = vmul.u32 %v680, %v682
    %v685 = vmul.u32 %v680, %v683
    %v686 = vmul.u32 %v681, %v682
    %v687 = vmul.u32 %v681, %v683
    %v688 = vshll.u32 %v685, 16
    %v689 = vshrl.u32 %v685, 16
    %v690 = vshll.u32 %v686, 16
    %v691 = vshrl.u32 %v686, 16
    %vm692 = vc.u32 %v684, %v688
    %v693 = vsel %vm692, 1, 0
    %v694 = vadd.s32 %v684, %v688
    %v695 = vadd.s32 %v687, %v693
    %vm696 = vc.u32 %v694, %v690
    %v697 = vsel %vm696, 1, 0
    %v698 = vadd.s32 %v694, %v690
    %v699 = vadd.s32 %v695, %v697
    %v700 = vadd.s32 %v699, %v689
    %v701 = vadd.s32 %v700, %v691
    %v702 = vmul.u32 %v657, %v648
    %v703 = vadd.s32 %v679, %v698
    %vm704 = vc.u32 %v679, %v698
    %v705 = vadd.s32 %v701, 1
    %v706 = vsel %vm704, %v705, %v701
    %v707 = vadd.s32 %v702, %v706
    %v708 = vadd.s32 %v707, 536870912
    %v709 = vshrl.u32 %v708, 30
    %v710 = vshll.u32 %v709, 30
    %v711 = vsub.s32 %v707, %v710
    %vm712 = vcmp.lt.s32.totalorder %v711, 0
    %v713 = vsub.s32 0, %v711
    %v714 = vsel %vm712, %v713, %v711
    %v715 = vclz %v714
    %v716 = vsub.s32 %v715, 2
    %vm717 = vcmp.gt.s32.totalorder 0, %v716
    %v718 = vsel %vm717, 0, %v716
    %v719 = vsub.s32 32, %v718
    %v720 = vshll.u32 %v711, %v718
    %v721 = vshrl.u32 %v703, %v719
    %v722 = vor.u32 %v720, %v721
    %v723 = vsub.s32 4294967266, %v718
    %v724 = vadd.s32 %v723, 127
    %v725 = vshll.u32 %v724, 23
    %v726 = vor.u32 4788187, %v725
    %v727 = vand.u32 2147483647, %v726
    %v729 = vcvt.s32.f32 %v722
    %v730 = vmul.f32 %v729, %v727
    %v731 = vxor.u32 %v730, 2147483648
    %v732 = vsel %vm611, %v731, %v730
    %v733 = vsub.s32 4, %v709
    %v734 = vsel %vm611, %v733, %v709
    %v735 = vsel %vm610, %v131, %v732
    %v736 = vsel %vm610, 0, %v734
    %v737 = vmul.f32 %v735, %v735
    %v738 = vmul.f32 %v737, -0.001358992
    %v739 = vadd.f32 %v738, 0.041655596
    %v740 = vmul.f32 %v737, %v739
    %v741 = vadd.f32 %v740, -0.4999988
    %v742 = vmul.f32 %v737, %v741
    %v743 = vadd.f32 1.0, %v742
    %v744 = vmul.f32 %v735, %v735
    %v745 = vmul.f32 %v744, -0.00019511016
    %v746 = vadd.f32 %v745, 0.008332121
    %v747 = vmul.f32 %v744, %v746
    %v748 = vadd.f32 %v747, -0.16666654
    %v749 = vmul.f32 %v744, %v748
    %v750 = vadd.f32 %v749, 1.0
    %v751 = vmul.f32 %v750, %v735
    %vm752 = vweird.f32 %v131
    %v753 = vadd.s32 %v736, 3
    %v754 = vand.u32 %v753, 3
    %vm755 = vcmp.lt.s32.totalorder %v754, 2
    %vm756 = vcmp.eq.s32.totalorder %v754, 0
    %v757 = vxor.u32 %v751, 2147483648
    %v758 = vsel %vm756, %v743, %v757
    %vm759 = vcmp.eq.s32.totalorder %v754, 2
    %v760 = vxor.u32 %v743, 2147483648
    %v761 = vsel %vm759, %v760, %v751
    %v762 = vsel %vm755, %v758, %v761
    %v763 = vsel %vm752, nan, %v762
    %v764 = vand.u32 2147483647, %v132
    %vm765 = vcmp.le.f32.partialorder %v764, 0.7853982
    %vm766 = vcmp.lt.s32.totalorder %v132, 0
    %v767 = vand.u32 %v132, 2139095040
    %v768 = vshrl.u32 %v767, 23
    %v769 = vsub.s32 %v768, 127
    %v770 = vand.u32 2147483647, %v132
    %v771 = vand.u32 %v770, 8388607
    %v772 = vor.u32 %v771, 8388608
    %v773 = vsub.s32 0, %v772
    %v774 = vadd.s32 %v769, 1
    %vm775 = vcmp.gt.s32.totalorder %v774, 0
    %v776 = vsel %vm775, %v774, 0
    %v777 = vshrl.u32 %v776, 5
    %v778 = vand.u32 %v776, 31
    %v779 = vsub.s32 32, %v778
    %v780 = vshrl.u32 683565275, %v779
    %v781 = vshll.u32 683565275, %v778
    %v782 = vshrl.u32 2475754826, %v779
    %v783 = vor.u32 %v781, %v782
    %v784 = vshll.u32 2475754826, %v778
    %v785 = vshrl.u32 2131351028, %v779
    %v786 = vor.u32 %v784, %v785
    %v787 = vshll.u32 2131351028, %v778
    %v788 = vshrl.u32 2102212464, %v779
    %v789 = vor.u32 %v787, %v788
    %v790 = vshll.u32 2102212464, %v778
    %v791 = vshrl.u32 920167782, %v779
    %v792 = vor.u32 %v790, %v791
    %v793 = vshll.u32 920167782, %v778
    %v794 = vshrl.u32 1326507024, %v779
    %v795 = vor.u32 %v793, %v794
    %vm796 = vcmp.lt.s32.totalorder %v777, 1
    %vm797 = vcmp.lt.s32.totalorder %v777, 2
    %vm798 = vcmp.lt.s32.totalorder %v777, 3
    %vm799 = vcmp.lt.s32.totalorder %v777, 4
    %v800 = vsel %vm796, %v780, %v783
    %v801 = vsel %vm799, %v789, 2102212464
    %v802 = vsel %vm798, %v786, %v801
    %v803 = vsel %vm797, %v800, %v802
    %v804 = vsel %vm796, %v783, %v786
    %v805 = vsel %vm799, %v792, 920167782
    %v806 = vsel %vm798, %v789, %v805
    %v807 = vsel %vm797, %v804, %v806
    %v808 = vsel %vm796, %v786, %v789
    %v809 = vsel %vm799, %v795, 1326507024
    %v810 = vsel %vm798, %v792, %v809
    %v811 = vsel %vm797, %v808, %v810
    %v812 = vshll.u32 %v772, 8
    %v813 = vand.u32 %v812, 65535
    %v814 = vshrl.u32 %v812, 16
    %v815 = vand.u32 %v811, 65535
    %v816 = vshrl.u32 %v811, 16
    %v817 = vmul.u32 %v813, %v815
    %v818 = vmul.u32 %v813, %v816
    %v819 = vmul.u32 %v814, %v815
    %v820 = vmul.u32 %v814, %v816
    %v821 = vshll.u32 %v818, 16
    %v822 = vshrl.u32 %v818, 16
    %v823 = vshll.u32 %v819, 16
    %v824 = vshrl.u32 %v819, 16
    %vm825 = vc.u32 %v817, %v821
    %v826 = vsel %vm825, 1, 0
    %v827 = vadd.s32 %v817, %v821
    %v828 = vadd.s32 %v820, %v826
    %vm829 = vc.u32 %v827, %v823
    %v830 = vsel %vm829, 1, 0
    %v831 = vadd.s32 %v827, %v823
    %v832 = vadd.s32 %v828, %v830
    %v833 = vadd.s32 %v832, %v822
    %v834 = vadd.s32 %v833, %v824
    %v835 = vand.u32 %v812, 65535
    %v836 = vshrl.u32 %v812, 16
    %v837 = vand.u32 %v807, 65535
    %v838 = vshrl.u32 %v807, 16
    %v839 = vmul.u32 %v835, %v837
    %v840 = vmul.u32 %v835, %v838
    %v841 = vmul.u32 %v836, %v837
    %v842 = vmul.u32 %v836, %v838
    %v843 = vshll.u32 %v840, 16
    %v844 = vshrl.u32 %v840, 16
    %v845 = vshll.u32 %v841, 16
    %v846 = vshrl.u32 %v841, 16
    %vm847 = vc.u32 %v839, %v843
    %v848 = vsel %vm847, 1, 0
    %v849 = vadd.s32 %v839, %v843
    %v850 = vadd.s32 %v842, %v848
    %vm851 = vc.u32 %v849, %v845
    %v852 = vsel %vm851, 1, 0
    %v853 = vadd.s32 %v849, %v845
    %v854 = vadd.s32 %v850, %v852
    %v855 = vadd.s32 %v854, %v844
    %v856 = vadd.s32 %v855, %v846
    %v857 = vmul.u32 %v812, %v803
    %v858 = vadd.s32 %v834, %v853
    %vm859 = vc.u32 %v834, %v853
    %v860 = vadd.s32 %v856, 1
    %v861 = vsel %vm859, %v860, %v856
    %v862 = vadd.s32 %v857, %v861
    %v863 = vadd.s32 %v862, 536870912
    %v864 = vshrl.u32 %v863, 30
    %v865 = vshll.u32 %v864, 30
    %v866 = vsub.s32 %v862, %v865
    %vm867 = vcmp.lt.s32.totalorder %v866, 0
    %v868 = vsub.s32 0, %v866
    %v869 = vsel %vm867, %v868, %v866
    %v870 = vclz %v869
    %v871 = vsub.s32 %v870, 2
    %vm872 = vcmp.gt.s32.totalorder 0, %v871
    %v873 = vsel %vm872, 0, %v871
    %v874 = vsub.s32 32, %v873
    %v875 = vshll.u32 %v866, %v873
    %v876 = vshrl.u32 %v858, %v874
    %v877 = vor.u32 %v875, %v876
    %v878 = vsub.s32 4294967266, %v873
    %v879 = vadd.s32 %v878, 127
    %v880 = vshll.u32 %v879, 23
    %v881 = vor.u32 4788187, %v880
    %v882 = vand.u32 2147483647, %v881
    %v884 = vcvt.s32.f32 %v877
    %v885 = vmul.f32 %v884, %v882
    %v886 = vxor.u32 %v885, 2147483648
    %v887 = vsel %vm766, %v886, %v885
    %v888 = vsub.s32 4, %v864
    %v889 = vsel %vm766, %v888, %v864
    %v890 = vsel %vm765, %v132, %v887
    %v891 = vsel %vm765, 0, %v889
    %v892 = vmul.f32 %v890, %v890
    %v893 = vmul.f32 %v892, -0.001358992
    %v894 = vadd.f32 %v893, 0.041655596
    %v895 = vmul.f32 %v892, %v894
    %v896 = vadd.f32 %v895, -0.4999988
    %v897 = vmul.f32 %v892, %v896
    %v898 = vadd.f32 1.0, %v897
    %v899 = vmul.f32 %v890, %v890
    %v900 = vmul.f32 %v899, -0.00019511016
    %v901 = vadd.f32 %v900, 0.008332121
    %v902 = vmul.f32 %v899, %v901
    %v903 = vadd.f32 %v902, -0.16666654
    %v904 = vmul.f32 %v899, %v903
    %v905 = vadd.f32 %v904, 1.0
    %v906 = vmul.f32 %v905, %v890
    %vm907 = vweird.f32 %v132
    %v908 = vadd.s32 %v891, 3
    %v909 = vand.u32 %v908, 3
    %vm910 = vcmp.lt.s32.totalorder %v909, 2
    %vm911 = vcmp.eq.s32.totalorder %v909, 0
    %v912 = vxor.u32 %v906, 2147483648
    %v913 = vsel %vm911, %v898, %v912
    %vm914 = vcmp.eq.s32.totalorder %v909, 2
    %v915 = vxor.u32 %v898, 2147483648
    %v916 = vsel %vm914, %v915, %v906
    %v917 = vsel %vm910, %v913, %v916
    %v918 = vsel %vm907, nan, %v917
    %v919 = vand.u32 2147483647, %v133
    %vm920 = vcmp.le.f32.partialorder %v919, 0.7853982
    %vm921 = vcmp.lt.s32.totalorder %v133, 0
    %v922 = vand.u32 %v133, 2139095040
    %v923 = vshrl.u32 %v922, 23
    %v924 = vsub.s32 %v923, 127
    %v925 = vand.u32 2147483647, %v133
    %v926 = vand.u32 %v925, 8388607
    %v927 = vor.u32 %v926, 8388608
    %v928 = vsub.s32 0, %v927
    %v929 = vadd.s32 %v924, 1
    %vm930 = vcmp.gt.s32.totalorder %v929, 0
    %v931 = vsel %vm930, %v929, 0
    %v932 = vshrl.u32 %v931, 5
    %v933 = vand.u32 %v931, 31
    %v934 = vsub.s32 32, %v933
    %v935 = vshrl.u32 683565275, %v934
    %v936 = vshll.u32 683565275, %v933
    %v937 = vshrl.u32 2475754826, %v934
    %v938 = vor.u32 %v936, %v937
    %v939 = vshll.u32 2475754826, %v933
    %v940 = vshrl.u32 2131351028, %v934
    %v941 = vor.u32 %v939, %v940
    %v942 = vshll.u32 2131351028, %v933
    %v943 = vshrl.u32 2102212464, %v934
    %v944 = vor.u32 %v942, %v943
    %v945 = vshll.u32 2102212464, %v933
    %v946 = vshrl.u32 920167782, %v934
    %v947 = vor.u32 %v945, %v946
    %v948 = vshll.u32 920167782, %v933
    %v949 = vshrl.u32 1326507024, %v934
    %v950 = vor.u32 %v948, %v949
    %vm951 = vcmp.lt.s32.totalorder %v932, 1
    %vm952 = vcmp.lt.s32.totalorder %v932, 2
    %vm953 = vcmp.lt.s32.totalorder %v932, 3
    %vm954 = vcmp.lt.s32.totalorder %v932, 4
    %v955 = vsel %vm951, %v935, %v938
    %v956 = vsel %vm954, %v944, 2102212464
    %v957 = vsel %vm953, %v941, %v956
    %v958 = vsel %vm952, %v955, %v957
    %v959 = vsel %vm951, %v938, %v941
    %v960 = vsel %vm954, %v947, 920167782
    %v961 = vsel %vm953, %v944, %v960
    %v962 = vsel %vm952, %v959, %v961
    %v963 = vsel %vm951, %v941, %v944
    %v964 = vsel %vm954, %v950, 1326507024
    %v965 = vsel %vm953, %v947, %v964
    %v966 = vsel %vm952, %v963, %v965
    %v967 = vshll.u32 %v927, 8
    %v968 = vand.u32 %v967, 65535
    %v969 = vshrl.u32 %v967, 16
    %v970 = vand.u32 %v966, 65535
    %v971 = vshrl.u32 %v966, 16
    %v972 = vmul.u32 %v968, %v970
    %v973 = vmul.u32 %v968, %v971
    %v974 = vmul.u32 %v969, %v970
    %v975 = vmul.u32 %v969, %v971
    %v976 = vshll.u32 %v973, 16
    %v977 = vshrl.u32 %v973, 16
    %v978 = vshll.u32 %v974, 16
    %v979 = vshrl.u32 %v974, 16
    %vm980 = vc.u32 %v972, %v976
    %v981 = vsel %vm980, 1, 0
    %v982 = vadd.s32 %v972, %v976
    %v983 = vadd.s32 %v975, %v981
    %vm984 = vc.u32 %v982, %v978
    %v985 = vsel %vm984, 1, 0
    %v986 = vadd.s32 %v982, %v978
    %v987 = vadd.s32 %v983, %v985
    %v988 = vadd.s32 %v987, %v977
    %v989 = vadd.s32 %v988, %v979
    %v990 = vand.u32 %v967, 65535
    %v991 = vshrl.u32 %v967, 16
    %v992 = vand.u32 %v962, 65535
    %v993 = vshrl.u32 %v962, 16
    %v994 = vmul.u32 %v990, %v992
    %v995 = vmul.u32 %v990, %v993
    %v996 = vmul.u32 %v991, %v992
    %v997 = vmul.u32 %v991, %v993
    %v998 = vshll.u32 %v995, 16
    %v999 = vshrl.u32 %v995, 16
    %v1000 = vshll.u32 %v996, 16
    %v1001 = vshrl.u32 %v996, 16
    %vm1002 = vc.u32 %v994, %v998
    %v1003 = vsel %vm1002, 1, 0
    %v1004 = vadd.s32 %v994, %v998
    %v1005 = vadd.s32 %v997, %v1003
    %vm1006 = vc.u32 %v1004, %v1000
    %v1007 = vsel %vm1006, 1, 0
    %v1008 = vadd.s32 %v1004, %v1000
    %v1009 = vadd.s32 %v1005, %v1007
    %v1010 = vadd.s32 %v1009, %v999
    %v1011 = vadd.s32 %v1010, %v1001
    %v1012 = vmul.u32 %v967, %v958
    %v1013 = vadd.s32 %v989, %v1008
    %vm1014 = vc.u32 %v989, %v1008
    %v1015 = vadd.s32 %v1011, 1
    %v1016 = vsel %vm1014, %v1015, %v1011
    %v1017 = vadd.s32 %v1012, %v1016
    %v1018 = vadd.s32 %v1017, 536870912
    %v1019 = vshrl.u32 %v1018, 30
    %v1020 = vshll.u32 %v1019, 30
    %v1021 = vsub.s32 %v1017, %v1020
    %vm1022 = vcmp.lt.s32.totalorder %v1021, 0
    %v1023 = vsub.s32 0, %v1021
    %v1024 = vsel %vm1022, %v1023, %v1021
    %v1025 = vclz %v1024
    %v1026 = vsub.s32 %v1025, 2
    %vm1027 = vcmp.gt.s32.totalorder 0, %v1026
    %v1028 = vsel %vm1027, 0, %v1026
    %v1029 = vsub.s32 32, %v1028
    %v1030 = vshll.u32 %v1021, %v1028
    %v1031 = vshrl.u32 %v1013, %v1029
    %v1032 = vor.u32 %v1030, %v1031
    %v1033 = vsub.s32 4294967266, %v1028
    %v1034 = vadd.s32 %v1033, 127
    %v1035 = vshll.u32 %v1034, 23
    %v1036 = vor.u32 4788187, %v1035
    %v1037 = vand.u32 2147483647, %v1036
    %v1039 = vcvt.s32.f32 %v1032
    %v1040 = vmul.f32 %v1039, %v1037
    %v1041 = vxor.u32 %v1040, 2147483648
    %v1042 = vsel %vm921, %v1041, %v1040
    %v1043 = vsub.s32 4, %v1019
    %v1044 = vsel %vm921, %v1043, %v1019
    %v1045 = vsel %vm920, %v133, %v1042
    %v1046 = vsel %vm920, 0, %v1044
    %v1047 = vmul.f32 %v1045, %v1045
    %v1048 = vmul.f32 %v1047, -0.001358992
    %v1049 = vadd.f32 %v1048, 0.041655596
    %v1050 = vmul.f32 %v1047, %v1049
    %v1051 = vadd.f32 %v1050, -0.4999988
    %v1052 = vmul.f32 %v1047, %v1051
    %v1053 = vadd.f32 1.0, %v1052
    %v1054 = vmul.f32 %v1045, %v1045
    %v1055 = vmul.f32 %v1054, -0.00019511016
    %v1056 = vadd.f32 %v1055, 0.008332121
    %v1057 = vmul.f32 %v1054, %v1056
    %v1058 = vadd.f32 %v1057, -0.16666654
    %v1059 = vmul.f32 %v1054, %v1058
    %v1060 = vadd.f32 %v1059, 1.0
    %v1061 = vmul.f32 %v1060, %v1045
    %vm1062 = vweird.f32 %v133
    %v1063 = vadd.s32 %v1046, 3
    %v1064 = vand.u32 %v1063, 3
    %vm1065 = vcmp.lt.s32.totalorder %v1064, 2
    %vm1066 = vcmp.eq.s32.totalorder %v1064, 0
    %v1067 = vxor.u32 %v1061, 2147483648
    %v1068 = vsel %vm1066, %v1053, %v1067
    %vm1069 = vcmp.eq.s32.totalorder %v1064, 2
    %v1070 = vxor.u32 %v1053, 2147483648
    %v1071 = vsel %vm1069, %v1070, %v1061
    %v1072 = vsel %vm1065, %v1068, %v1071
    %v1073 = vsel %vm1062, nan, %v1072
    %v1074 = vand.u32 2147483647, %v134
    %vm1075 = vcmp.le.f32.partialorder %v1074, 0.7853982
    %vm1076 = vcmp.lt.s32.totalorder %v134, 0
    %v1077 = vand.u32 %v134, 2139095040
    %v1078 = vshrl.u32 %v1077, 23
    %v1079 = vsub.s32 %v1078, 127
    %v1080 = vand.u32 2147483647, %v134
    %v1081 = vand.u32 %v1080, 8388607
    %v1082 = vor.u32 %v1081, 8388608
    %v1083 = vsub.s32 0, %v1082
    %v1084 = vadd.s32 %v1079, 1
    %vm1085 = vcmp.gt.s32.totalorder %v1084, 0
    %v1086 = vsel %vm1085, %v1084, 0
    %v1087 = vshrl.u32 %v1086, 5
    %v1088 = vand.u32 %v1086, 31
    %v1089 = vsub.s32 32, %v1088
    %v1090 = vshrl.u32 683565275, %v1089
    %v1091 = vshll.u32 683565275, %v1088
    %v1092 = vshrl.u32 2475754826, %v1089
    %v1093 = vor.u32 %v1091, %v1092
    %v1094 = vshll.u32 2475754826, %v1088
    %v1095 = vshrl.u32 2131351028, %v1089
    %v1096 = vor.u32 %v1094, %v1095
    %v1097 = vshll.u32 2131351028, %v1088
    %v1098 = vshrl.u32 2102212464, %v1089
    %v1099 = vor.u32 %v1097, %v1098
    %v1100 = vshll.u32 2102212464, %v1088
    %v1101 = vshrl.u32 920167782, %v1089
    %v1102 = vor.u32 %v1100, %v1101
    %v1103 = vshll.u32 920167782, %v1088
    %v1104 = vshrl.u32 1326507024, %v1089
    %v1105 = vor.u32 %v1103, %v1104
    %vm1106 = vcmp.lt.s32.totalorder %v1087, 1
    %vm1107 = vcmp.lt.s32.totalorder %v1087, 2
    %vm1108 = vcmp.lt.s32.totalorder %v1087, 3
    %vm1109 = vcmp.lt.s32.totalorder %v1087, 4
    %v1110 = vsel %vm1106, %v1090, %v1093
    %v1111 = vsel %vm1109, %v1099, 2102212464
    %v1112 = vsel %vm1108, %v1096, %v1111
    %v1113 = vsel %vm1107, %v1110, %v1112
    %v1114 = vsel %vm1106, %v1093, %v1096
    %v1115 = vsel %vm1109, %v1102, 920167782
    %v1116 = vsel %vm1108, %v1099, %v1115
    %v1117 = vsel %vm1107, %v1114, %v1116
    %v1118 = vsel %vm1106, %v1096, %v1099
    %v1119 = vsel %vm1109, %v1105, 1326507024
    %v1120 = vsel %vm1108, %v1102, %v1119
    %v1121 = vsel %vm1107, %v1118, %v1120
    %v1122 = vshll.u32 %v1082, 8
    %v1123 = vand.u32 %v1122, 65535
    %v1124 = vshrl.u32 %v1122, 16
    %v1125 = vand.u32 %v1121, 65535
    %v1126 = vshrl.u32 %v1121, 16
    %v1127 = vmul.u32 %v1123, %v1125
    %v1128 = vmul.u32 %v1123, %v1126
    %v1129 = vmul.u32 %v1124, %v1125
    %v1130 = vmul.u32 %v1124, %v1126
    %v1131 = vshll.u32 %v1128, 16
    %v1132 = vshrl.u32 %v1128, 16
    %v1133 = vshll.u32 %v1129, 16
    %v1134 = vshrl.u32 %v1129, 16
    %vm1135 = vc.u32 %v1127, %v1131
    %v1136 = vsel %vm1135, 1, 0
    %v1137 = vadd.s32 %v1127, %v1131
    %v1138 = vadd.s32 %v1130, %v1136
    %vm1139 = vc.u32 %v1137, %v1133
    %v1140 = vsel %vm1139, 1, 0
    %v1141 = vadd.s32 %v1137, %v1133
    %v1142 = vadd.s32 %v1138, %v1140
    %v1143 = vadd.s32 %v1142, %v1132
    %v1144 = vadd.s32 %v1143, %v1134
    %v1145 = vand.u32 %v1122, 65535
    %v1146 = vshrl.u32 %v1122, 16
    %v1147 = vand.u32 %v1117, 65535
    %v1148 = vshrl.u32 %v1117, 16
    %v1149 = vmul.u32 %v1145, %v1147
    %v1150 = vmul.u32 %v1145, %v1148
    %v1151 = vmul.u32 %v1146, %v1147
    %v1152 = vmul.u32 %v1146, %v1148
    %v1153 = vshll.u32 %v1150, 16
    %v1154 = vshrl.u32 %v1150, 16
    %v1155 = vshll.u32 %v1151, 16
    %v1156 = vshrl.u32 %v1151, 16
    %vm1157 = vc.u32 %v1149, %v1153
    %v1158 = vsel %vm1157, 1, 0
    %v1159 = vadd.s32 %v1149, %v1153
    %v1160 = vadd.s32 %v1152, %v1158
    %vm1161 = vc.u32 %v1159, %v1155
    %v1162 = vsel %vm1161, 1, 0
    %v1163 = vadd.s32 %v1159, %v1155
    %v1164 = vadd.s32 %v1160, %v1162
    %v1165 = vadd.s32 %v1164, %v1154
    %v1166 = vadd.s32 %v1165, %v1156
    %v1167 = vmul.u32 %v1122, %v1113
    %v1168 = vadd.s32 %v1144, %v1163
    %vm1169 = vc.u32 %v1144, %v1163
    %v1170 = vadd.s32 %v1166, 1
    %v1171 = vsel %vm1169, %v1170, %v1166
    %v1172 = vadd.s32 %v1167, %v1171
    %v1173 = vadd.s32 %v1172, 536870912
    %v1174 = vshrl.u32 %v1173, 30
    %v1175 = vshll.u32 %v1174, 30
    %v1176 = vsub.s32 %v1172, %v1175
    %vm1177 = vcmp.lt.s32.totalorder %v1176, 0
    %v1178 = vsub.s32 0, %v1176
    %v1179 = vsel %vm1177, %v1178, %v1176
    %v1180 = vclz %v1179
    %v1181 = vsub.s32 %v1180, 2
    %vm1182 = vcmp.gt.s32.totalorder 0, %v1181
    %v1183 = vsel %vm1182, 0, %v1181
    %v1184 = vsub.s32 32, %v1183
    %v1185 = vshll.u32 %v1176, %v1183
    %v1186 = vshrl.u32 %v1168, %v1184
    %v1187 = vor.u32 %v1185, %v1186
    %v1188 = vsub.s32 4294967266, %v1183
    %v1189 = vadd.s32 %v1188, 127
    %v1190 = vshll.u32 %v1189, 23
    %v1191 = vor.u32 4788187, %v1190
    %v1192 = vand.u32 2147483647, %v1191
    %v1194 = vcvt.s32.f32 %v1187
    %v1195 = vmul.f32 %v1194, %v1192
    %v1196 = vxor.u32 %v1195, 2147483648
    %v1197 = vsel %vm1076, %v1196, %v1195
    %v1198 = vsub.s32 4, %v1174
    %v1199 = vsel %vm1076, %v1198, %v1174
    %v1200 = vsel %vm1075, %v134, %v1197
    %v1201 = vsel %vm1075, 0, %v1199
    %v1202 = vmul.f32 %v1200, %v1200
    %v1203 = vmul.f32 %v1202, -0.001358992
    %v1204 = vadd.f32 %v1203, 0.041655596
    %v1205 = vmul.f32 %v1202, %v1204
    %v1206 = vadd.f32 %v1205, -0.4999988
    %v1207 = vmul.f32 %v1202, %v1206
    %v1208 = vadd.f32 1.0, %v1207
    %v1209 = vmul.f32 %v1200, %v1200
    %v1210 = vmul.f32 %v1209, -0.00019511016
    %v1211 = vadd.f32 %v1210, 0.008332121
    %v1212 = vmul.f32 %v1209, %v1211
    %v1213 = vadd.f32 %v1212, -0.16666654
    %v1214 = vmul.f32 %v1209, %v1213
    %v1215 = vadd.f32 %v1214, 1.0
    %v1216 = vmul.f32 %v1215, %v1200
    %vm1217 = vweird.f32 %v134
    %v1218 = vadd.s32 %v1201, 3
    %v1219 = vand.u32 %v1218, 3
    %vm1220 = vcmp.lt.s32.totalorder %v1219, 2
    %vm1221 = vcmp.eq.s32.totalorder %v1219, 0
    %v1222 = vxor.u32 %v1216, 2147483648
    %v1223 = vsel %vm1221, %v1208, %v1222
    %vm1224 = vcmp.eq.s32.totalorder %v1219, 2
    %v1225 = vxor.u32 %v1208, 2147483648
    %v1226 = vsel %vm1224, %v1225, %v1216
    %v1227 = vsel %vm1220, %v1223, %v1226
    %v1228 = vsel %vm1217, nan, %v1227
    %v1229 = vand.u32 2147483647, %v135
    %vm1230 = vcmp.le.f32.partialorder %v1229, 0.7853982
    %vm1231 = vcmp.lt.s32.totalorder %v135, 0
    %v1232 = vand.u32 %v135, 2139095040
    %v1233 = vshrl.u32 %v1232, 23
    %v1234 = vsub.s32 %v1233, 127
    %v1235 = vand.u32 2147483647, %v135
    %v1236 = vand.u32 %v1235, 8388607
    %v1237 = vor.u32 %v1236, 8388608
    %v1238 = vsub.s32 0, %v1237
    %v1239 = vadd.s32 %v1234, 1
    %vm1240 = vcmp.gt.s32.totalorder %v1239, 0
    %v1241 = vsel %vm1240, %v1239, 0
    %v1242 = vshrl.u32 %v1241, 5
    %v1243 = vand.u32 %v1241, 31
    %v1244 = vsub.s32 32, %v1243
    %v1245 = vshrl.u32 683565275, %v1244
    %v1246 = vshll.u32 683565275, %v1243
    %v1247 = vshrl.u32 2475754826, %v1244
    %v1248 = vor.u32 %v1246, %v1247
    %v1249 = vshll.u32 2475754826, %v1243
    %v1250 = vshrl.u32 2131351028, %v1244
    %v1251 = vor.u32 %v1249, %v1250
    %v1252 = vshll.u32 2131351028, %v1243
    %v1253 = vshrl.u32 2102212464, %v1244
    %v1254 = vor.u32 %v1252, %v1253
    %v1255 = vshll.u32 2102212464, %v1243
    %v1256 = vshrl.u32 920167782, %v1244
    %v1257 = vor.u32 %v1255, %v1256
    %v1258 = vshll.u32 920167782, %v1243
    %v1259 = vshrl.u32 1326507024, %v1244
    %v1260 = vor.u32 %v1258, %v1259
    %vm1261 = vcmp.lt.s32.totalorder %v1242, 1
    %vm1262 = vcmp.lt.s32.totalorder %v1242, 2
    %vm1263 = vcmp.lt.s32.totalorder %v1242, 3
    %vm1264 = vcmp.lt.s32.totalorder %v1242, 4
    %v1265 = vsel %vm1261, %v1245, %v1248
    %v1266 = vsel %vm1264, %v1254, 2102212464
    %v1267 = vsel %vm1263, %v1251, %v1266
    %v1268 = vsel %vm1262, %v1265, %v1267
    %v1269 = vsel %vm1261, %v1248, %v1251
    %v1270 = vsel %vm1264, %v1257, 920167782
    %v1271 = vsel %vm1263, %v1254, %v1270
    %v1272 = vsel %vm1262, %v1269, %v1271
    %v1273 = vsel %vm1261, %v1251, %v1254
    %v1274 = vsel %vm1264, %v1260, 1326507024
    %v1275 = vsel %vm1263, %v1257, %v1274
    %v1276 = vsel %vm1262, %v1273, %v1275
    %v1277 = vshll.u32 %v1237, 8
    %v1278 = vand.u32 %v1277, 65535
    %v1279 = vshrl.u32 %v1277, 16
    %v1280 = vand.u32 %v1276, 65535
    %v1281 = vshrl.u32 %v1276, 16
    %v1282 = vmul.u32 %v1278, %v1280
    %v1283 = vmul.u32 %v1278, %v1281
    %v1284 = vmul.u32 %v1279, %v1280
    %v1285 = vmul.u32 %v1279, %v1281
    %v1286 = vshll.u32 %v1283, 16
    %v1287 = vshrl.u32 %v1283, 16
    %v1288 = vshll.u32 %v1284, 16
    %v1289 = vshrl.u32 %v1284, 16
    %vm1290 = vc.u32 %v1282, %v1286
    %v1291 = vsel %vm1290, 1, 0
    %v1292 = vadd.s32 %v1282, %v1286
    %v1293 = vadd.s32 %v1285, %v1291
    %vm1294 = vc.u32 %v1292, %v1288
    %v1295 = vsel %vm1294, 1, 0
    %v1296 = vadd.s32 %v1292, %v1288
    %v1297 = vadd.s32 %v1293, %v1295
    %v1298 = vadd.s32 %v1297, %v1287
    %v1299 = vadd.s32 %v1298, %v1289
    %v1300 = vand.u32 %v1277, 65535
    %v1301 = vshrl.u32 %v1277, 16
    %v1302 = vand.u32 %v1272, 65535
    %v1303 = vshrl.u32 %v1272, 16
    %v1304 = vmul.u32 %v1300, %v1302
    %v1305 = vmul.u32 %v1300, %v1303
    %v1306 = vmul.u32 %v1301, %v1302
    %v1307 = vmul.u32 %v1301, %v1303
    %v1308 = vshll.u32 %v1305, 16
    %v1309 = vshrl.u32 %v1305, 16
    %v1310 = vshll.u32 %v1306, 16
    %v1311 = vshrl.u32 %v1306, 16
    %vm1312 = vc.u32 %v1304, %v1308
    %v1313 = vsel %vm1312, 1, 0
    %v1314 = vadd.s32 %v1304, %v1308
    %v1315 = vadd.s32 %v1307, %v1313
    %vm1316 = vc.u32 %v1314, %v1310
    %v1317 = vsel %vm1316, 1, 0
    %v1318 = vadd.s32 %v1314, %v1310
    %v1319 = vadd.s32 %v1315, %v1317
    %v1320 = vadd.s32 %v1319, %v1309
    %v1321 = vadd.s32 %v1320, %v1311
    %v1322 = vmul.u32 %v1277, %v1268
    %v1323 = vadd.s32 %v1299, %v1318
    %vm1324 = vc.u32 %v1299, %v1318
    %v1325 = vadd.s32 %v1321, 1
    %v1326 = vsel %vm1324, %v1325, %v1321
    %v1327 = vadd.s32 %v1322, %v1326
    %v1328 = vadd.s32 %v1327, 536870912
    %v1329 = vshrl.u32 %v1328, 30
    %v1330 = vshll.u32 %v1329, 30
    %v1331 = vsub.s32 %v1327, %v1330
    %vm1332 = vcmp.lt.s32.totalorder %v1331, 0
    %v1333 = vsub.s32 0, %v1331
    %v1334 = vsel %vm1332, %v1333, %v1331
    %v1335 = vclz %v1334
    %v1336 = vsub.s32 %v1335, 2
    %vm1337 = vcmp.gt.s32.totalorder 0, %v1336
    %v1338 = vsel %vm1337, 0, %v1336
    %v1339 = vsub.s32 32, %v1338
    %v1340 = vshll.u32 %v1331, %v1338
    %v1341 = vshrl.u32 %v1323, %v1339
    %v1342 = vor.u32 %v1340, %v1341
    %v1343 = vsub.s32 4294967266, %v1338
    %v1344 = vadd.s32 %v1343, 127
    %v1345 = vshll.u32 %v1344, 23
    %v1346 = vor.u32 4788187, %v1345
    %v1347 = vand.u32 2147483647, %v1346
    %v1349 = vcvt.s32.f32 %v1342
    %v1350 = vmul.f32 %v1349, %v1347
    %v1351 = vxor.u32 %v1350, 2147483648
    %v1352 = vsel %vm1231, %v1351, %v1350
    %v1353 = vsub.s32 4, %v1329
    %v1354 = vsel %vm1231, %v1353, %v1329
    %v1355 = vsel %vm1230, %v135, %v1352
    %v1356 = vsel %vm1230, 0, %v1354
    %v1357 = vmul.f32 %v1355, %v1355
    %v1358 = vmul.f32 %v1357, -0.001358992
    %v1359 = vadd.f32 %v1358, 0.041655596
    %v1360 = vmul.f32 %v1357, %v1359
    %v1361 = vadd.f32 %v1360, -0.4999988
    %v1362 = vmul.f32 %v1357, %v1361
    %v1363 = vadd.f32 1.0, %v1362
    %v1364 = vmul.f32 %v1355, %v1355
    %v1365 = vmul.f32 %v1364, -0.00019511016
    %v1366 = vadd.f32 %v1365, 0.008332121
    %v1367 = vmul.f32 %v1364, %v1366
    %v1368 = vadd.f32 %v1367, -0.16666654
    %v1369 = vmul.f32 %v1364, %v1368
    %v1370 = vadd.f32 %v1369, 1.0
    %v1371 = vmul.f32 %v1370, %v1355
    %vm1372 = vweird.f32 %v135
    %v1373 = vadd.s32 %v1356, 3
    %v1374 = vand.u32 %v1373, 3
    %vm1375 = vcmp.lt.s32.totalorder %v1374, 2
    %vm1376 = vcmp.eq.s32.totalorder %v1374, 0
    %v1377 = vxor.u32 %v1371, 2147483648
    %v1378 = vsel %vm1376, %v1363, %v1377
    %vm1379 = vcmp.eq.s32.totalorder %v1374, 2
    %v1380 = vxor.u32 %v1363, 2147483648
    %v1381 = vsel %vm1379, %v1380, %v1371
    %v1382 = vsel %vm1375, %v1378, %v1381
    %v1383 = vsel %vm1372, nan, %v1382
    %v1384 = vand.u32 2147483647, %v136
    %vm1385 = vcmp.le.f32.partialorder %v1384, 0.7853982
    %vm1386 = vcmp.lt.s32.totalorder %v136, 0
    %v1387 = vand.u32 %v136, 2139095040
    %v1388 = vshrl.u32 %v1387, 23
    %v1389 = vsub.s32 %v1388, 127
    %v1390 = vand.u32 2147483647, %v136
    %v1391 = vand.u32 %v1390, 8388607
    %v1392 = vor.u32 %v1391, 8388608
    %v1393 = vsub.s32 0, %v1392
    %v1394 = vadd.s32 %v1389, 1
    %vm1395 = vcmp.gt.s32.totalorder %v1394, 0
    %v1396 = vsel %vm1395, %v1394, 0
    %v1397 = vshrl.u32 %v1396, 5
    %v1398 = vand.u32 %v1396, 31
    %v1399 = vsub.s32 32, %v1398
    %v1400 = vshrl.u32 683565275, %v1399
    %v1401 = vshll.u32 683565275, %v1398
    %v1402 = vshrl.u32 2475754826, %v1399
    %v1403 = vor.u32 %v1401, %v1402
    %v1404 = vshll.u32 2475754826, %v1398
    %v1405 = vshrl.u32 2131351028, %v1399
    %v1406 = vor.u32 %v1404, %v1405
    %v1407 = vshll.u32 2131351028, %v1398
    %v1408 = vshrl.u32 2102212464, %v1399
    %v1409 = vor.u32 %v1407, %v1408
    %v1410 = vshll.u32 2102212464, %v1398
    %v1411 = vshrl.u32 920167782, %v1399
    %v1412 = vor.u32 %v1410, %v1411
    %v1413 = vshll.u32 920167782, %v1398
    %v1414 = vshrl.u32 1326507024, %v1399
    %v1415 = vor.u32 %v1413, %v1414
    %vm1416 = vcmp.lt.s32.totalorder %v1397, 1
    %vm1417 = vcmp.lt.s32.totalorder %v1397, 2
    %vm1418 = vcmp.lt.s32.totalorder %v1397, 3
    %vm1419 = vcmp.lt.s32.totalorder %v1397, 4
    %v1420 = vsel %vm1416, %v1400, %v1403
    %v1421 = vsel %vm1419, %v1409, 2102212464
    %v1422 = vsel %vm1418, %v1406, %v1421
    %v1423 = vsel %vm1417, %v1420, %v1422
    %v1424 = vsel %vm1416, %v1403, %v1406
    %v1425 = vsel %vm1419, %v1412, 920167782
    %v1426 = vsel %vm1418, %v1409, %v1425
    %v1427 = vsel %vm1417, %v1424, %v1426
    %v1428 = vsel %vm1416, %v1406, %v1409
    %v1429 = vsel %vm1419, %v1415, 1326507024
    %v1430 = vsel %vm1418, %v1412, %v1429
    %v1431 = vsel %vm1417, %v1428, %v1430
    %v1432 = vshll.u32 %v1392, 8
    %v1433 = vand.u32 %v1432, 65535
    %v1434 = vshrl.u32 %v1432, 16
    %v1435 = vand.u32 %v1431, 65535
    %v1436 = vshrl.u32 %v1431, 16
    %v1437 = vmul.u32 %v1433, %v1435
    %v1438 = vmul.u32 %v1433, %v1436
    %v1439 = vmul.u32 %v1434, %v1435
    %v1440 = vmul.u32 %v1434, %v1436
    %v1441 = vshll.u32 %v1438, 16
    %v1442 = vshrl.u32 %v1438, 16
    %v1443 = vshll.u32 %v1439, 16
    %v1444 = vshrl.u32 %v1439, 16
    %vm1445 = vc.u32 %v1437, %v1441
    %v1446 = vsel %vm1445, 1, 0
    %v1447 = vadd.s32 %v1437, %v1441
    %v1448 = vadd.s32 %v1440, %v1446
    %vm1449 = vc.u32 %v1447, %v1443
    %v1450 = vsel %vm1449, 1, 0
    %v1451 = vadd.s32 %v1447, %v1443
    %v1452 = vadd.s32 %v1448, %v1450
    %v1453 = vadd.s32 %v1452, %v1442
    %v1454 = vadd.s32 %v1453, %v1444
    %v1455 = vand.u32 %v1432, 65535
    %v1456 = vshrl.u32 %v1432, 16
    %v1457 = vand.u32 %v1427, 65535
    %v1458 = vshrl.u32 %v1427, 16
    %v1459 = vmul.u32 %v1455, %v1457
    %v1460 = vmul.u32 %v1455, %v1458
    %v1461 = vmul.u32 %v1456, %v1457
    %v1462 = vmul.u32 %v1456, %v1458
    %v1463 = vshll.u32 %v1460, 16
    %v1464 = vshrl.u32 %v1460, 16
    %v1465 = vshll.u32 %v1461, 16
    %v1466 = vshrl.u32 %v1461, 16
    %vm1467 = vc.u32 %v1459, %v1463
    %v1468 = vsel %vm1467, 1, 0
    %v1469 = vadd.s32 %v1459, %v1463
    %v1470 = vadd.s32 %v1462, %v1468
    %vm1471 = vc.u32 %v1469, %v1465
    %v1472 = vsel %vm1471, 1, 0
    %v1473 = vadd.s32 %v1469, %v1465
    %v1474 = vadd.s32 %v1470, %v1472
    %v1475 = vadd.s32 %v1474, %v1464
    %v1476 = vadd.s32 %v1475, %v1466
    %v1477 = vmul.u32 %v1432, %v1423
    %v1478 = vadd.s32 %v1454, %v1473
    %vm1479 = vc.u32 %v1454, %v1473
    %v1480 = vadd.s32 %v1476, 1
    %v1481 = vsel %vm1479, %v1480, %v1476
    %v1482 = vadd.s32 %v1477, %v1481
    %v1483 = vadd.s32 %v1482, 536870912
    %v1484 = vshrl.u32 %v1483, 30
    %v1485 = vshll.u32 %v1484, 30
    %v1486 = vsub.s32 %v1482, %v1485
    %vm1487 = vcmp.lt.s32.totalorder %v1486, 0
    %v1488 = vsub.s32 0, %v1486
    %v1489 = vsel %vm1487, %v1488, %v1486
    %v1490 = vclz %v1489
    %v1491 = vsub.s32 %v1490, 2
    %vm1492 = vcmp.gt.s32.totalorder 0, %v1491
    %v1493 = vsel %vm1492, 0, %v1491
    %v1494 = vsub.s32 32, %v1493
    %v1495 = vshll.u32 %v1486, %v1493
    %v1496 = vshrl.u32 %v1478, %v1494
    %v1497 = vor.u32 %v1495, %v1496
    %v1498 = vsub.s32 4294967266, %v1493
    %v1499 = vadd.s32 %v1498, 127
    %v1500 = vshll.u32 %v1499, 23
    %v1501 = vor.u32 4788187, %v1500
    %v1502 = vand.u32 2147483647, %v1501
    %v1504 = vcvt.s32.f32 %v1497
    %v1505 = vmul.f32 %v1504, %v1502
    %v1506 = vxor.u32 %v1505, 2147483648
    %v1507 = vsel %vm1386, %v1506, %v1505
    %v1508 = vsub.s32 4, %v1484
    %v1509 = vsel %vm1386, %v1508, %v1484
    %v1510 = vsel %vm1385, %v136, %v1507
    %v1511 = vsel %vm1385, 0, %v1509
    %v1512 = vmul.f32 %v1510, %v1510
    %v1513 = vmul.f32 %v1512, -0.001358992
    %v1514 = vadd.f32 %v1513, 0.041655596
    %v1515 = vmul.f32 %v1512, %v1514
    %v1516 = vadd.f32 %v1515, -0.4999988
    %v1517 = vmul.f32 %v1512, %v1516
    %v1518 = vadd.f32 1.0, %v1517
    %v1519 = vmul.f32 %v1510, %v1510
    %v1520 = vmul.f32 %v1519, -0.00019511016
    %v1521 = vadd.f32 %v1520, 0.008332121
    %v1522 = vmul.f32 %v1519, %v1521
    %v1523 = vadd.f32 %v1522, -0.16666654
    %v1524 = vmul.f32 %v1519, %v1523
    %v1525 = vadd.f32 %v1524, 1.0
    %v1526 = vmul.f32 %v1525, %v1510
    %vm1527 = vweird.f32 %v136
    %v1528 = vadd.s32 %v1511, 3
    %v1529 = vand.u32 %v1528, 3
    %vm1530 = vcmp.lt.s32.totalorder %v1529, 2
    %vm1531 = vcmp.eq.s32.totalorder %v1529, 0
    %v1532 = vxor.u32 %v1526, 2147483648
    %v1533 = vsel %vm1531, %v1518, %v1532
    %vm1534 = vcmp.eq.s32.totalorder %v1529, 2
    %v1535 = vxor.u32 %v1518, 2147483648
    %v1536 = vsel %vm1534, %v1535, %v1526
    %v1537 = vsel %vm1530, %v1533, %v1536
    %v1538 = vsel %vm1527, nan, %v1537
    %v1539 = vand.u32 2147483647, %v137
    %vm1540 = vcmp.le.f32.partialorder %v1539, 0.7853982
    %vm1541 = vcmp.lt.s32.totalorder %v137, 0
    %v1542 = vand.u32 %v137, 2139095040
    %v1543 = vshrl.u32 %v1542, 23
    %v1544 = vsub.s32 %v1543, 127
    %v1545 = vand.u32 2147483647, %v137
    %v1546 = vand.u32 %v1545, 8388607
    %v1547 = vor.u32 %v1546, 8388608
    %v1548 = vsub.s32 0, %v1547
    %v1549 = vadd.s32 %v1544, 1
    %vm1550 = vcmp.gt.s32.totalorder %v1549, 0
    %v1551 = vsel %vm1550, %v1549, 0
    %v1552 = vshrl.u32 %v1551, 5
    %v1553 = vand.u32 %v1551, 31
    %v1554 = vsub.s32 32, %v1553
    %v1555 = vshrl.u32 683565275, %v1554
    %v1556 = vshll.u32 683565275, %v1553
    %v1557 = vshrl.u32 2475754826, %v1554
    %v1558 = vor.u32 %v1556, %v1557
    %v1559 = vshll.u32 2475754826, %v1553
    %v1560 = vshrl.u32 2131351028, %v1554
    %v1561 = vor.u32 %v1559, %v1560
    %v1562 = vshll.u32 2131351028, %v1553
    %v1563 = vshrl.u32 2102212464, %v1554
    %v1564 = vor.u32 %v1562, %v1563
    %v1565 = vshll.u32 2102212464, %v1553
    %v1566 = vshrl.u32 920167782, %v1554
    %v1567 = vor.u32 %v1565, %v1566
    %v1568 = vshll.u32 920167782, %v1553
    %v1569 = vshrl.u32 1326507024, %v1554
    %v1570 = vor.u32 %v1568, %v1569
    %vm1571 = vcmp.lt.s32.totalorder %v1552, 1
    %vm1572 = vcmp.lt.s32.totalorder %v1552, 2
    %vm1573 = vcmp.lt.s32.totalorder %v1552, 3
    %vm1574 = vcmp.lt.s32.totalorder %v1552, 4
    %v1575 = vsel %vm1571, %v1555, %v1558
    %v1576 = vsel %vm1574, %v1564, 2102212464
    %v1577 = vsel %vm1573, %v1561, %v1576
    %v1578 = vsel %vm1572, %v1575, %v1577
    %v1579 = vsel %vm1571, %v1558, %v1561
    %v1580 = vsel %vm1574, %v1567, 920167782
    %v1581 = vsel %vm1573, %v1564, %v1580
    %v1582 = vsel %vm1572, %v1579, %v1581
    %v1583 = vsel %vm1571, %v1561, %v1564
    %v1584 = vsel %vm1574, %v1570, 1326507024
    %v1585 = vsel %vm1573, %v1567, %v1584
    %v1586 = vsel %vm1572, %v1583, %v1585
    %v1587 = vshll.u32 %v1547, 8
    %v1588 = vand.u32 %v1587, 65535
    %v1589 = vshrl.u32 %v1587, 16
    %v1590 = vand.u32 %v1586, 65535
    %v1591 = vshrl.u32 %v1586, 16
    %v1592 = vmul.u32 %v1588, %v1590
    %v1593 = vmul.u32 %v1588, %v1591
    %v1594 = vmul.u32 %v1589, %v1590
    %v1595 = vmul.u32 %v1589, %v1591
    %v1596 = vshll.u32 %v1593, 16
    %v1597 = vshrl.u32 %v1593, 16
    %v1598 = vshll.u32 %v1594, 16
    %v1599 = vshrl.u32 %v1594, 16
    %vm1600 = vc.u32 %v1592, %v1596
    %v1601 = vsel %vm1600, 1, 0
    %v1602 = vadd.s32 %v1592, %v1596
    %v1603 = vadd.s32 %v1595, %v1601
    %vm1604 = vc.u32 %v1602, %v1598
    %v1605 = vsel %vm1604, 1, 0
    %v1606 = vadd.s32 %v1602, %v1598
    %v1607 = vadd.s32 %v1603, %v1605
    %v1608 = vadd.s32 %v1607, %v1597
    %v1609 = vadd.s32 %v1608, %v1599
    %v1610 = vand.u32 %v1587, 65535
    %v1611 = vshrl.u32 %v1587, 16
    %v1612 = vand.u32 %v1582, 65535
    %v1613 = vshrl.u32 %v1582, 16
    %v1614 = vmul.u32 %v1610, %v1612
    %v1615 = vmul.u32 %v1610, %v1613
    %v1616 = vmul.u32 %v1611, %v1612
    %v1617 = vmul.u32 %v1611, %v1613
    %v1618 = vshll.u32 %v1615, 16
    %v1619 = vshrl.u32 %v1615, 16
    %v1620 = vshll.u32 %v1616, 16
    %v1621 = vshrl.u32 %v1616, 16
    %vm1622 = vc.u32 %v1614, %v1618
    %v1623 = vsel %vm1622, 1, 0
    %v1624 = vadd.s32 %v1614, %v1618
    %v1625 = vadd.s32 %v1617, %v1623
    %vm1626 = vc.u32 %v1624, %v1620
    %v1627 = vsel %vm1626, 1, 0
    %v1628 = vadd.s32 %v1624, %v1620
    %v1629 = vadd.s32 %v1625, %v1627
    %v1630 = vadd.s32 %v1629, %v1619
    %v1631 = vadd.s32 %v1630, %v1621
    %v1632 = vmul.u32 %v1587, %v1578
    %v1633 = vadd.s32 %v1609, %v1628
    %vm1634 = vc.u32 %v1609, %v1628
    %v1635 = vadd.s32 %v1631, 1
    %v1636 = vsel %vm1634, %v1635, %v1631
    %v1637 = vadd.s32 %v1632, %v1636
    %v1638 = vadd.s32 %v1637, 536870912
    %v1639 = vshrl.u32 %v1638, 30
    %v1640 = vshll.u32 %v1639, 30
    %v1641 = vsub.s32 %v1637, %v1640
    %vm1642 = vcmp.lt.s32.totalorder %v1641, 0
    %v1643 = vsub.s32 0, %v1641
    %v1644 = vsel %vm1642, %v1643, %v1641
    %v1645 = vclz %v1644
    %v1646 = vsub.s32 %v1645, 2
    %vm1647 = vcmp.gt.s32.totalorder 0, %v1646
    %v1648 = vsel %vm1647, 0, %v1646
    %v1649 = vsub.s32 32, %v1648
    %v1650 = vshll.u32 %v1641, %v1648
    %v1651 = vshrl.u32 %v1633, %v1649
    %v1652 = vor.u32 %v1650, %v1651
    %v1653 = vsub.s32 4294967266, %v1648
    %v1654 = vadd.s32 %v1653, 127
    %v1655 = vshll.u32 %v1654, 23
    %v1656 = vor.u32 4788187, %v1655
    %v1657 = vand.u32 2147483647, %v1656
    %v1659 = vcvt.s32.f32 %v1652
    %v1660 = vmul.f32 %v1659, %v1657
    %v1661 = vxor.u32 %v1660, 2147483648
    %v1662 = vsel %vm1541, %v1661, %v1660
    %v1663 = vsub.s32 4, %v1639
    %v1664 = vsel %vm1541, %v1663, %v1639
    %v1665 = vsel %vm1540, %v137, %v1662
    %v1666 = vsel %vm1540, 0, %v1664
    %v1667 = vmul.f32 %v1665, %v1665
    %v1668 = vmul.f32 %v1667, -0.001358992
    %v1669 = vadd.f32 %v1668, 0.041655596
    %v1670 = vmul.f32 %v1667, %v1669
    %v1671 = vadd.f32 %v1670, -0.4999988
    %v1672 = vmul.f32 %v1667, %v1671
    %v1673 = vadd.f32 1.0, %v1672
    %v1674 = vmul.f32 %v1665, %v1665
    %v1675 = vmul.f32 %v1674, -0.00019511016
    %v1676 = vadd.f32 %v1675, 0.008332121
    %v1677 = vmul.f32 %v1674, %v1676
    %v1678 = vadd.f32 %v1677, -0.16666654
    %v1679 = vmul.f32 %v1674, %v1678
    %v1680 = vadd.f32 %v1679, 1.0
    %v1681 = vmul.f32 %v1680, %v1665
    %vm1682 = vweird.f32 %v137
    %v1683 = vadd.s32 %v1666, 3
    %v1684 = vand.u32 %v1683, 3
    %vm1685 = vcmp.lt.s32.totalorder %v1684, 2
    %vm1686 = vcmp.eq.s32.totalorder %v1684, 0
    %v1687 = vxor.u32 %v1681, 2147483648
    %v1688 = vsel %vm1686, %v1673, %v1687
    %vm1689 = vcmp.eq.s32.totalorder %v1684, 2
    %v1690 = vxor.u32 %v1673, 2147483648
    %v1691 = vsel %vm1689, %v1690, %v1681
    %v1692 = vsel %vm1685, %v1688, %v1691
    %v1693 = vsel %vm1682, nan, %v1692
    %v1694 = vand.u32 2147483647, %v138
    %vm1695 = vcmp.le.f32.partialorder %v1694, 0.7853982
    %vm1696 = vcmp.lt.s32.totalorder %v138, 0
    %v1697 = vand.u32 %v138, 2139095040
    %v1698 = vshrl.u32 %v1697, 23
    %v1699 = vsub.s32 %v1698, 127
    %v1700 = vand.u32 2147483647, %v138
    %v1701 = vand.u32 %v1700, 8388607
    %v1702 = vor.u32 %v1701, 8388608
    %v1703 = vsub.s32 0, %v1702
    %v1704 = vadd.s32 %v1699, 1
    %vm1705 = vcmp.gt.s32.totalorder %v1704, 0
    %v1706 = vsel %vm1705, %v1704, 0
    %v1707 = vshrl.u32 %v1706, 5
    %v1708 = vand.u32 %v1706, 31
    %v1709 = vsub.s32 32, %v1708
    %v1710 = vshrl.u32 683565275, %v1709
    %v1711 = vshll.u32 683565275, %v1708
    %v1712 = vshrl.u32 2475754826, %v1709
    %v1713 = vor.u32 %v1711, %v1712
    %v1714 = vshll.u32 2475754826, %v1708
    %v1715 = vshrl.u32 2131351028, %v1709
    %v1716 = vor.u32 %v1714, %v1715
    %v1717 = vshll.u32 2131351028, %v1708
    %v1718 = vshrl.u32 2102212464, %v1709
    %v1719 = vor.u32 %v1717, %v1718
    %v1720 = vshll.u32 2102212464, %v1708
    %v1721 = vshrl.u32 920167782, %v1709
    %v1722 = vor.u32 %v1720, %v1721
    %v1723 = vshll.u32 920167782, %v1708
    %v1724 = vshrl.u32 1326507024, %v1709
    %v1725 = vor.u32 %v1723, %v1724
    %vm1726 = vcmp.lt.s32.totalorder %v1707, 1
    %vm1727 = vcmp.lt.s32.totalorder %v1707, 2
    %vm1728 = vcmp.lt.s32.totalorder %v1707, 3
    %vm1729 = vcmp.lt.s32.totalorder %v1707, 4
    %v1730 = vsel %vm1726, %v1710, %v1713
    %v1731 = vsel %vm1729, %v1719, 2102212464
    %v1732 = vsel %vm1728, %v1716, %v1731
    %v1733 = vsel %vm1727, %v1730, %v1732
    %v1734 = vsel %vm1726, %v1713, %v1716
    %v1735 = vsel %vm1729, %v1722, 920167782
    %v1736 = vsel %vm1728, %v1719, %v1735
    %v1737 = vsel %vm1727, %v1734, %v1736
    %v1738 = vsel %vm1726, %v1716, %v1719
    %v1739 = vsel %vm1729, %v1725, 1326507024
    %v1740 = vsel %vm1728, %v1722, %v1739
    %v1741 = vsel %vm1727, %v1738, %v1740
    %v1742 = vshll.u32 %v1702, 8
    %v1743 = vand.u32 %v1742, 65535
    %v1744 = vshrl.u32 %v1742, 16
    %v1745 = vand.u32 %v1741, 65535
    %v1746 = vshrl.u32 %v1741, 16
    %v1747 = vmul.u32 %v1743, %v1745
    %v1748 = vmul.u32 %v1743, %v1746
    %v1749 = vmul.u32 %v1744, %v1745
    %v1750 = vmul.u32 %v1744, %v1746
    %v1751 = vshll.u32 %v1748, 16
    %v1752 = vshrl.u32 %v1748, 16
    %v1753 = vshll.u32 %v1749, 16
    %v1754 = vshrl.u32 %v1749, 16
    %vm1755 = vc.u32 %v1747, %v1751
    %v1756 = vsel %vm1755, 1, 0
    %v1757 = vadd.s32 %v1747, %v1751
    %v1758 = vadd.s32 %v1750, %v1756
    %vm1759 = vc.u32 %v1757, %v1753
    %v1760 = vsel %vm1759, 1, 0
    %v1761 = vadd.s32 %v1757, %v1753
    %v1762 = vadd.s32 %v1758, %v1760
    %v1763 = vadd.s32 %v1762, %v1752
    %v1764 = vadd.s32 %v1763, %v1754
    %v1765 = vand.u32 %v1742, 65535
    %v1766 = vshrl.u32 %v1742, 16
    %v1767 = vand.u32 %v1737, 65535
    %v1768 = vshrl.u32 %v1737, 16
    %v1769 = vmul.u32 %v1765, %v1767
    %v1770 = vmul.u32 %v1765, %v1768
    %v1771 = vmul.u32 %v1766, %v1767
    %v1772 = vmul.u32 %v1766, %v1768
    %v1773 = vshll.u32 %v1770, 16
    %v1774 = vshrl.u32 %v1770, 16
    %v1775 = vshll.u32 %v1771, 16
    %v1776 = vshrl.u32 %v1771, 16
    %vm1777 = vc.u32 %v1769, %v1773
    %v1778 = vsel %vm1777, 1, 0
    %v1779 = vadd.s32 %v1769, %v1773
    %v1780 = vadd.s32 %v1772, %v1778
    %vm1781 = vc.u32 %v1779, %v1775
    %v1782 = vsel %vm1781, 1, 0
    %v1783 = vadd.s32 %v1779, %v1775
    %v1784 = vadd.s32 %v1780, %v1782
    %v1785 = vadd.s32 %v1784, %v1774
    %v1786 = vadd.s32 %v1785, %v1776
    %v1787 = vmul.u32 %v1742, %v1733
    %v1788 = vadd.s32 %v1764, %v1783
    %vm1789 = vc.u32 %v1764, %v1783
    %v1790 = vadd.s32 %v1786, 1
    %v1791 = vsel %vm1789, %v1790, %v1786
    %v1792 = vadd.s32 %v1787, %v1791
    %v1793 = vadd.s32 %v1792, 536870912
    %v1794 = vshrl.u32 %v1793, 30
    %v1795 = vshll.u32 %v1794, 30
    %v1796 = vsub.s32 %v1792, %v1795
    %vm1797 = vcmp.lt.s32.totalorder %v1796, 0
    %v1798 = vsub.s32 0, %v1796
    %v1799 = vsel %vm1797, %v1798, %v1796
    %v1800 = vclz %v1799
    %v1801 = vsub.s32 %v1800, 2
    %vm1802 = vcmp.gt.s32.totalorder 0, %v1801
    %v1803 = vsel %vm1802, 0, %v1801
    %v1804 = vsub.s32 32, %v1803
    %v1805 = vshll.u32 %v1796, %v1803
    %v1806 = vshrl.u32 %v1788, %v1804
    %v1807 = vor.u32 %v1805, %v1806
    %v1808 = vsub.s32 4294967266, %v1803
    %v1809 = vadd.s32 %v1808, 127
    %v1810 = vshll.u32 %v1809, 23
    %v1811 = vor.u32 4788187, %v1810
    %v1812 = vand.u32 2147483647, %v1811
    %v1814 = vcvt.s32.f32 %v1807
    %v1815 = vmul.f32 %v1814, %v1812
    %v1816 = vxor.u32 %v1815, 2147483648
    %v1817 = vsel %vm1696, %v1816, %v1815
    %v1818 = vsub.s32 4, %v1794
    %v1819 = vsel %vm1696, %v1818, %v1794
    %v1820 = vsel %vm1695, %v138, %v1817
    %v1821 = vsel %vm1695, 0, %v1819
    %v1822 = vmul.f32 %v1820, %v1820
    %v1823 = vmul.f32 %v1822, -0.001358992
    %v1824 = vadd.f32 %v1823, 0.041655596
    %v1825 = vmul.f32 %v1822, %v1824
    %v1826 = vadd.f32 %v1825, -0.4999988
    %v1827 = vmul.f32 %v1822, %v1826
    %v1828 = vadd.f32 1.0, %v1827
    %v1829 = vmul.f32 %v1820, %v1820
    %v1830 = vmul.f32 %v1829, -0.00019511016
    %v1831 = vadd.f32 %v1830, 0.008332121
    %v1832 = vmul.f32 %v1829, %v1831
    %v1833 = vadd.f32 %v1832, -0.16666654
    %v1834 = vmul.f32 %v1829, %v1833
    %v1835 = vadd.f32 %v1834, 1.0
    %v1836 = vmul.f32 %v1835, %v1820
    %vm1837 = vweird.f32 %v138
    %v1838 = vadd.s32 %v1821, 3
    %v1839 = vand.u32 %v1838, 3
    %vm1840 = vcmp.lt.s32.totalorder %v1839, 2
    %vm1841 = vcmp.eq.s32.totalorder %v1839, 0
    %v1842 = vxor.u32 %v1836, 2147483648
    %v1843 = vsel %vm1841, %v1828, %v1842
    %vm1844 = vcmp.eq.s32.totalorder %v1839, 2
    %v1845 = vxor.u32 %v1828, 2147483648
    %v1846 = vsel %vm1844, %v1845, %v1836
    %v1847 = vsel %vm1840, %v1843, %v1846
    %v1848 = vsel %vm1837, nan, %v1847
    %v1849 = vand.u32 2147483647, %v139
    %vm1850 = vcmp.le.f32.partialorder %v1849, 0.7853982
    %vm1851 = vcmp.lt.s32.totalorder %v139, 0
    %v1852 = vand.u32 %v139, 2139095040
    %v1853 = vshrl.u32 %v1852, 23
    %v1854 = vsub.s32 %v1853, 127
    %v1855 = vand.u32 2147483647, %v139
    %v1856 = vand.u32 %v1855, 8388607
    %v1857 = vor.u32 %v1856, 8388608
    %v1858 = vsub.s32 0, %v1857
    %v1859 = vadd.s32 %v1854, 1
    %vm1860 = vcmp.gt.s32.totalorder %v1859, 0
    %v1861 = vsel %vm1860, %v1859, 0
    %v1862 = vshrl.u32 %v1861, 5
    %v1863 = vand.u32 %v1861, 31
    %v1864 = vsub.s32 32, %v1863
    %v1865 = vshrl.u32 683565275, %v1864
    %v1866 = vshll.u32 683565275, %v1863
    %v1867 = vshrl.u32 2475754826, %v1864
    %v1868 = vor.u32 %v1866, %v1867
    %v1869 = vshll.u32 2475754826, %v1863
    %v1870 = vshrl.u32 2131351028, %v1864
    %v1871 = vor.u32 %v1869, %v1870
    %v1872 = vshll.u32 2131351028, %v1863
    %v1873 = vshrl.u32 2102212464, %v1864
    %v1874 = vor.u32 %v1872, %v1873
    %v1875 = vshll.u32 2102212464, %v1863
    %v1876 = vshrl.u32 920167782, %v1864
    %v1877 = vor.u32 %v1875, %v1876
    %v1878 = vshll.u32 920167782, %v1863
    %v1879 = vshrl.u32 1326507024, %v1864
    %v1880 = vor.u32 %v1878, %v1879
    %vm1881 = vcmp.lt.s32.totalorder %v1862, 1
    %vm1882 = vcmp.lt.s32.totalorder %v1862, 2
    %vm1883 = vcmp.lt.s32.totalorder %v1862, 3
    %vm1884 = vcmp.lt.s32.totalorder %v1862, 4
    %v1885 = vsel %vm1881, %v1865, %v1868
    %v1886 = vsel %vm1884, %v1874, 2102212464
    %v1887 = vsel %vm1883, %v1871, %v1886
    %v1888 = vsel %vm1882, %v1885, %v1887
    %v1889 = vsel %vm1881, %v1868, %v1871
    %v1890 = vsel %vm1884, %v1877, 920167782
    %v1891 = vsel %vm1883, %v1874, %v1890
    %v1892 = vsel %vm1882, %v1889, %v1891
    %v1893 = vsel %vm1881, %v1871, %v1874
    %v1894 = vsel %vm1884, %v1880, 1326507024
    %v1895 = vsel %vm1883, %v1877, %v1894
    %v1896 = vsel %vm1882, %v1893, %v1895
    %v1897 = vshll.u32 %v1857, 8
    %v1898 = vand.u32 %v1897, 65535
    %v1899 = vshrl.u32 %v1897, 16
    %v1900 = vand.u32 %v1896, 65535
    %v1901 = vshrl.u32 %v1896, 16
    %v1902 = vmul.u32 %v1898, %v1900
    %v1903 = vmul.u32 %v1898, %v1901
    %v1904 = vmul.u32 %v1899, %v1900
    %v1905 = vmul.u32 %v1899, %v1901
    %v1906 = vshll.u32 %v1903, 16
    %v1907 = vshrl.u32 %v1903, 16
    %v1908 = vshll.u32 %v1904, 16
    %v1909 = vshrl.u32 %v1904, 16
    %vm1910 = vc.u32 %v1902, %v1906
    %v1911 = vsel %vm1910, 1, 0
    %v1912 = vadd.s32 %v1902, %v1906
    %v1913 = vadd.s32 %v1905, %v1911
    %vm1914 = vc.u32 %v1912, %v1908
    %v1915 = vsel %vm1914, 1, 0
    %v1916 = vadd.s32 %v1912, %v1908
    %v1917 = vadd.s32 %v1913, %v1915
    %v1918 = vadd.s32 %v1917, %v1907
    %v1919 = vadd.s32 %v1918, %v1909
    %v1920 = vand.u32 %v1897, 65535
    %v1921 = vshrl.u32 %v1897, 16
    %v1922 = vand.u32 %v1892, 65535
    %v1923 = vshrl.u32 %v1892, 16
    %v1924 = vmul.u32 %v1920, %v1922
    %v1925 = vmul.u32 %v1920, %v1923
    %v1926 = vmul.u32 %v1921, %v1922
    %v1927 = vmul.u32 %v1921, %v1923
    %v1928 = vshll.u32 %v1925, 16
    %v1929 = vshrl.u32 %v1925, 16
    %v1930 = vshll.u32 %v1926, 16
    %v1931 = vshrl.u32 %v1926, 16
    %vm1932 = vc.u32 %v1924, %v1928
    %v1933 = vsel %vm1932, 1, 0
    %v1934 = vadd.s32 %v1924, %v1928
    %v1935 = vadd.s32 %v1927, %v1933
    %vm1936 = vc.u32 %v1934, %v1930
    %v1937 = vsel %vm1936, 1, 0
    %v1938 = vadd.s32 %v1934, %v1930
    %v1939 = vadd.s32 %v1935, %v1937
    %v1940 = vadd.s32 %v1939, %v1929
    %v1941 = vadd.s32 %v1940, %v1931
    %v1942 = vmul.u32 %v1897, %v1888
    %v1943 = vadd.s32 %v1919, %v1938
    %vm1944 = vc.u32 %v1919, %v1938
    %v1945 = vadd.s32 %v1941, 1
    %v1946 = vsel %vm1944, %v1945, %v1941
    %v1947 = vadd.s32 %v1942, %v1946
    %v1948 = vadd.s32 %v1947, 536870912
    %v1949 = vshrl.u32 %v1948, 30
    %v1950 = vshll.u32 %v1949, 30
    %v1951 = vsub.s32 %v1947, %v1950
    %vm1952 = vcmp.lt.s32.totalorder %v1951, 0
    %v1953 = vsub.s32 0, %v1951
    %v1954 = vsel %vm1952, %v1953, %v1951
    %v1955 = vclz %v1954
    %v1956 = vsub.s32 %v1955, 2
    %vm1957 = vcmp.gt.s32.totalorder 0, %v1956
    %v1958 = vsel %vm1957, 0, %v1956
    %v1959 = vsub.s32 32, %v1958
    %v1960 = vshll.u32 %v1951, %v1958
    %v1961 = vshrl.u32 %v1943, %v1959
    %v1962 = vor.u32 %v1960, %v1961
    %v1963 = vsub.s32 4294967266, %v1958
    %v1964 = vadd.s32 %v1963, 127
    %v1965 = vshll.u32 %v1964, 23
    %v1966 = vor.u32 4788187, %v1965
    %v1967 = vand.u32 2147483647, %v1966
    %v1969 = vcvt.s32.f32 %v1962
    %v1970 = vmul.f32 %v1969, %v1967
    %v1971 = vxor.u32 %v1970, 2147483648
    %v1972 = vsel %vm1851, %v1971, %v1970
    %v1973 = vsub.s32 4, %v1949
    %v1974 = vsel %vm1851, %v1973, %v1949
    %v1975 = vsel %vm1850, %v139, %v1972
    %v1976 = vsel %vm1850, 0, %v1974
    %v1977 = vmul.f32 %v1975, %v1975
    %v1978 = vmul.f32 %v1977, -0.001358992
    %v1979 = vadd.f32 %v1978, 0.041655596
    %v1980 = vmul.f32 %v1977, %v1979
    %v1981 = vadd.f32 %v1980, -0.4999988
    %v1982 = vmul.f32 %v1977, %v1981
    %v1983 = vadd.f32 1.0, %v1982
    %v1984 = vmul.f32 %v1975, %v1975
    %v1985 = vmul.f32 %v1984, -0.00019511016
    %v1986 = vadd.f32 %v1985, 0.008332121
    %v1987 = vmul.f32 %v1984, %v1986
    %v1988 = vadd.f32 %v1987, -0.16666654
    %v1989 = vmul.f32 %v1984, %v1988
    %v1990 = vadd.f32 %v1989, 1.0
    %v1991 = vmul.f32 %v1990, %v1975
    %vm1992 = vweird.f32 %v139
    %v1993 = vadd.s32 %v1976, 3
    %v1994 = vand.u32 %v1993, 3
    %vm1995 = vcmp.lt.s32.totalorder %v1994, 2
    %vm1996 = vcmp.eq.s32.totalorder %v1994, 0
    %v1997 = vxor.u32 %v1991, 2147483648
    %v1998 = vsel %vm1996, %v1983, %v1997
    %vm1999 = vcmp.eq.s32.totalorder %v1994, 2
    %v2000 = vxor.u32 %v1983, 2147483648
    %v2001 = vsel %vm1999, %v2000, %v1991
    %v2002 = vsel %vm1995, %v1998, %v2001
    %v2003 = vsel %vm1992, nan, %v2002
    %v2004 = vand.u32 2147483647, %v140
    %vm2005 = vcmp.le.f32.partialorder %v2004, 0.7853982
    %vm2006 = vcmp.lt.s32.totalorder %v140, 0
    %v2007 = vand.u32 %v140, 2139095040
    %v2008 = vshrl.u32 %v2007, 23
    %v2009 = vsub.s32 %v2008, 127
    %v2010 = vand.u32 2147483647, %v140
    %v2011 = vand.u32 %v2010, 8388607
    %v2012 = vor.u32 %v2011, 8388608
    %v2013 = vsub.s32 0, %v2012
    %v2014 = vadd.s32 %v2009, 1
    %vm2015 = vcmp.gt.s32.totalorder %v2014, 0
    %v2016 = vsel %vm2015, %v2014, 0
    %v2017 = vshrl.u32 %v2016, 5
    %v2018 = vand.u32 %v2016, 31
    %v2019 = vsub.s32 32, %v2018
    %v2020 = vshrl.u32 683565275, %v2019
    %v2021 = vshll.u32 683565275, %v2018
    %v2022 = vshrl.u32 2475754826, %v2019
    %v2023 = vor.u32 %v2021, %v2022
    %v2024 = vshll.u32 2475754826, %v2018
    %v2025 = vshrl.u32 2131351028, %v2019
    %v2026 = vor.u32 %v2024, %v2025
    %v2027 = vshll.u32 2131351028, %v2018
    %v2028 = vshrl.u32 2102212464, %v2019
    %v2029 = vor.u32 %v2027, %v2028
    %v2030 = vshll.u32 2102212464, %v2018
    %v2031 = vshrl.u32 920167782, %v2019
    %v2032 = vor.u32 %v2030, %v2031
    %v2033 = vshll.u32 920167782, %v2018
    %v2034 = vshrl.u32 1326507024, %v2019
    %v2035 = vor.u32 %v2033, %v2034
    %vm2036 = vcmp.lt.s32.totalorder %v2017, 1
    %vm2037 = vcmp.lt.s32.totalorder %v2017, 2
    %vm2038 = vcmp.lt.s32.totalorder %v2017, 3
    %vm2039 = vcmp.lt.s32.totalorder %v2017, 4
    %v2040 = vsel %vm2036, %v2020, %v2023
    %v2041 = vsel %vm2039, %v2029, 2102212464
    %v2042 = vsel %vm2038, %v2026, %v2041
    %v2043 = vsel %vm2037, %v2040, %v2042
    %v2044 = vsel %vm2036, %v2023, %v2026
    %v2045 = vsel %vm2039, %v2032, 920167782
    %v2046 = vsel %vm2038, %v2029, %v2045
    %v2047 = vsel %vm2037, %v2044, %v2046
    %v2048 = vsel %vm2036, %v2026, %v2029
    %v2049 = vsel %vm2039, %v2035, 1326507024
    %v2050 = vsel %vm2038, %v2032, %v2049
    %v2051 = vsel %vm2037, %v2048, %v2050
    %v2052 = vshll.u32 %v2012, 8
    %v2053 = vand.u32 %v2052, 65535
    %v2054 = vshrl.u32 %v2052, 16
    %v2055 = vand.u32 %v2051, 65535
    %v2056 = vshrl.u32 %v2051, 16
    %v2057 = vmul.u32 %v2053, %v2055
    %v2058 = vmul.u32 %v2053, %v2056
    %v2059 = vmul.u32 %v2054, %v2055
    %v2060 = vmul.u32 %v2054, %v2056
    %v2061 = vshll.u32 %v2058, 16
    %v2062 = vshrl.u32 %v2058, 16
    %v2063 = vshll.u32 %v2059, 16
    %v2064 = vshrl.u32 %v2059, 16
    %vm2065 = vc.u32 %v2057, %v2061
    %v2066 = vsel %vm2065, 1, 0
    %v2067 = vadd.s32 %v2057, %v2061
    %v2068 = vadd.s32 %v2060, %v2066
    %vm2069 = vc.u32 %v2067, %v2063
    %v2070 = vsel %vm2069, 1, 0
    %v2071 = vadd.s32 %v2067, %v2063
    %v2072 = vadd.s32 %v2068, %v2070
    %v2073 = vadd.s32 %v2072, %v2062
    %v2074 = vadd.s32 %v2073, %v2064
    %v2075 = vand.u32 %v2052, 65535
    %v2076 = vshrl.u32 %v2052, 16
    %v2077 = vand.u32 %v2047, 65535
    %v2078 = vshrl.u32 %v2047, 16
    %v2079 = vmul.u32 %v2075, %v2077
    %v2080 = vmul.u32 %v2075, %v2078
    %v2081 = vmul.u32 %v2076, %v2077
    %v2082 = vmul.u32 %v2076, %v2078
    %v2083 = vshll.u32 %v2080, 16
    %v2084 = vshrl.u32 %v2080, 16
    %v2085 = vshll.u32 %v2081, 16
    %v2086 = vshrl.u32 %v2081, 16
    %vm2087 = vc.u32 %v2079, %v2083
    %v2088 = vsel %vm2087, 1, 0
    %v2089 = vadd.s32 %v2079, %v2083
    %v2090 = vadd.s32 %v2082, %v2088
    %vm2091 = vc.u32 %v2089, %v2085
    %v2092 = vsel %vm2091, 1, 0
    %v2093 = vadd.s32 %v2089, %v2085
    %v2094 = vadd.s32 %v2090, %v2092
    %v2095 = vadd.s32 %v2094, %v2084
    %v2096 = vadd.s32 %v2095, %v2086
    %v2097 = vmul.u32 %v2052, %v2043
    %v2098 = vadd.s32 %v2074, %v2093
    %vm2099 = vc.u32 %v2074, %v2093
    %v2100 = vadd.s32 %v2096, 1
    %v2101 = vsel %vm2099, %v2100, %v2096
    %v2102 = vadd.s32 %v2097, %v2101
    %v2103 = vadd.s32 %v2102, 536870912
    %v2104 = vshrl.u32 %v2103, 30
    %v2105 = vshll.u32 %v2104, 30
    %v2106 = vsub.s32 %v2102, %v2105
    %vm2107 = vcmp.lt.s32.totalorder %v2106, 0
    %v2108 = vsub.s32 0, %v2106
    %v2109 = vsel %vm2107, %v2108, %v2106
    %v2110 = vclz %v2109
    %v2111 = vsub.s32 %v2110, 2
    %vm2112 = vcmp.gt.s32.totalorder 0, %v2111
    %v2113 = vsel %vm2112, 0, %v2111
    %v2114 = vsub.s32 32, %v2113
    %v2115 = vshll.u32 %v2106, %v2113
    %v2116 = vshrl.u32 %v2098, %v2114
    %v2117 = vor.u32 %v2115, %v2116
    %v2118 = vsub.s32 4294967266, %v2113
    %v2119 = vadd.s32 %v2118, 127
    %v2120 = vshll.u32 %v2119, 23
    %v2121 = vor.u32 4788187, %v2120
    %v2122 = vand.u32 2147483647, %v2121
    %v2124 = vcvt.s32.f32 %v2117
    %v2125 = vmul.f32 %v2124, %v2122
    %v2126 = vxor.u32 %v2125, 2147483648
    %v2127 = vsel %vm2006, %v2126, %v2125
    %v2128 = vsub.s32 4, %v2104
    %v2129 = vsel %vm2006, %v2128, %v2104
    %v2130 = vsel %vm2005, %v140, %v2127
    %v2131 = vsel %vm2005, 0, %v2129
    %v2132 = vmul.f32 %v2130, %v2130
    %v2133 = vmul.f32 %v2132, -0.001358992
    %v2134 = vadd.f32 %v2133, 0.041655596
    %v2135 = vmul.f32 %v2132, %v2134
    %v2136 = vadd.f32 %v2135, -0.4999988
    %v2137 = vmul.f32 %v2132, %v2136
    %v2138 = vadd.f32 1.0, %v2137
    %v2139 = vmul.f32 %v2130, %v2130
    %v2140 = vmul.f32 %v2139, -0.00019511016
    %v2141 = vadd.f32 %v2140, 0.008332121
    %v2142 = vmul.f32 %v2139, %v2141
    %v2143 = vadd.f32 %v2142, -0.16666654
    %v2144 = vmul.f32 %v2139, %v2143
    %v2145 = vadd.f32 %v2144, 1.0
    %v2146 = vmul.f32 %v2145, %v2130
    %vm2147 = vweird.f32 %v140
    %v2148 = vadd.s32 %v2131, 3
    %v2149 = vand.u32 %v2148, 3
    %vm2150 = vcmp.lt.s32.totalorder %v2149, 2
    %vm2151 = vcmp.eq.s32.totalorder %v2149, 0
    %v2152 = vxor.u32 %v2146, 2147483648
    %v2153 = vsel %vm2151, %v2138, %v2152
    %vm2154 = vcmp.eq.s32.totalorder %v2149, 2
    %v2155 = vxor.u32 %v2138, 2147483648
    %v2156 = vsel %vm2154, %v2155, %v2146
    %v2157 = vsel %vm2150, %v2153, %v2156
    %v2158 = vsel %vm2147, nan, %v2157
    %v2159 = vand.u32 2147483647, %v141
    %vm2160 = vcmp.le.f32.partialorder %v2159, 0.7853982
    %vm2161 = vcmp.lt.s32.totalorder %v141, 0
    %v2162 = vand.u32 %v141, 2139095040
    %v2163 = vshrl.u32 %v2162, 23
    %v2164 = vsub.s32 %v2163, 127
    %v2165 = vand.u32 2147483647, %v141
    %v2166 = vand.u32 %v2165, 8388607
    %v2167 = vor.u32 %v2166, 8388608
    %v2168 = vsub.s32 0, %v2167
    %v2169 = vadd.s32 %v2164, 1
    %vm2170 = vcmp.gt.s32.totalorder %v2169, 0
    %v2171 = vsel %vm2170, %v2169, 0
    %v2172 = vshrl.u32 %v2171, 5
    %v2173 = vand.u32 %v2171, 31
    %v2174 = vsub.s32 32, %v2173
    %v2175 = vshrl.u32 683565275, %v2174
    %v2176 = vshll.u32 683565275, %v2173
    %v2177 = vshrl.u32 2475754826, %v2174
    %v2178 = vor.u32 %v2176, %v2177
    %v2179 = vshll.u32 2475754826, %v2173
    %v2180 = vshrl.u32 2131351028, %v2174
    %v2181 = vor.u32 %v2179, %v2180
    %v2182 = vshll.u32 2131351028, %v2173
    %v2183 = vshrl.u32 2102212464, %v2174
    %v2184 = vor.u32 %v2182, %v2183
    %v2185 = vshll.u32 2102212464, %v2173
    %v2186 = vshrl.u32 920167782, %v2174
    %v2187 = vor.u32 %v2185, %v2186
    %v2188 = vshll.u32 920167782, %v2173
    %v2189 = vshrl.u32 1326507024, %v2174
    %v2190 = vor.u32 %v2188, %v2189
    %vm2191 = vcmp.lt.s32.totalorder %v2172, 1
    %vm2192 = vcmp.lt.s32.totalorder %v2172, 2
    %vm2193 = vcmp.lt.s32.totalorder %v2172, 3
    %vm2194 = vcmp.lt.s32.totalorder %v2172, 4
    %v2195 = vsel %vm2191, %v2175, %v2178
    %v2196 = vsel %vm2194, %v2184, 2102212464
    %v2197 = vsel %vm2193, %v2181, %v2196
    %v2198 = vsel %vm2192, %v2195, %v2197
    %v2199 = vsel %vm2191, %v2178, %v2181
    %v2200 = vsel %vm2194, %v2187, 920167782
    %v2201 = vsel %vm2193, %v2184, %v2200
    %v2202 = vsel %vm2192, %v2199, %v2201
    %v2203 = vsel %vm2191, %v2181, %v2184
    %v2204 = vsel %vm2194, %v2190, 1326507024
    %v2205 = vsel %vm2193, %v2187, %v2204
    %v2206 = vsel %vm2192, %v2203, %v2205
    %v2207 = vshll.u32 %v2167, 8
    %v2208 = vand.u32 %v2207, 65535
    %v2209 = vshrl.u32 %v2207, 16
    %v2210 = vand.u32 %v2206, 65535
    %v2211 = vshrl.u32 %v2206, 16
    %v2212 = vmul.u32 %v2208, %v2210
    %v2213 = vmul.u32 %v2208, %v2211
    %v2214 = vmul.u32 %v2209, %v2210
    %v2215 = vmul.u32 %v2209, %v2211
    %v2216 = vshll.u32 %v2213, 16
    %v2217 = vshrl.u32 %v2213, 16
    %v2218 = vshll.u32 %v2214, 16
    %v2219 = vshrl.u32 %v2214, 16
    %vm2220 = vc.u32 %v2212, %v2216
    %v2221 = vsel %vm2220, 1, 0
    %v2222 = vadd.s32 %v2212, %v2216
    %v2223 = vadd.s32 %v2215, %v2221
    %vm2224 = vc.u32 %v2222, %v2218
    %v2225 = vsel %vm2224, 1, 0
    %v2226 = vadd.s32 %v2222, %v2218
    %v2227 = vadd.s32 %v2223, %v2225
    %v2228 = vadd.s32 %v2227, %v2217
    %v2229 = vadd.s32 %v2228, %v2219
    %v2230 = vand.u32 %v2207, 65535
    %v2231 = vshrl.u32 %v2207, 16
    %v2232 = vand.u32 %v2202, 65535
    %v2233 = vshrl.u32 %v2202, 16
    %v2234 = vmul.u32 %v2230, %v2232
    %v2235 = vmul.u32 %v2230, %v2233
    %v2236 = vmul.u32 %v2231, %v2232
    %v2237 = vmul.u32 %v2231, %v2233
    %v2238 = vshll.u32 %v2235, 16
    %v2239 = vshrl.u32 %v2235, 16
    %v2240 = vshll.u32 %v2236, 16
    %v2241 = vshrl.u32 %v2236, 16
    %vm2242 = vc.u32 %v2234, %v2238
    %v2243 = vsel %vm2242, 1, 0
    %v2244 = vadd.s32 %v2234, %v2238
    %v2245 = vadd.s32 %v2237, %v2243
    %vm2246 = vc.u32 %v2244, %v2240
    %v2247 = vsel %vm2246, 1, 0
    %v2248 = vadd.s32 %v2244, %v2240
    %v2249 = vadd.s32 %v2245, %v2247
    %v2250 = vadd.s32 %v2249, %v2239
    %v2251 = vadd.s32 %v2250, %v2241
    %v2252 = vmul.u32 %v2207, %v2198
    %v2253 = vadd.s32 %v2229, %v2248
    %vm2254 = vc.u32 %v2229, %v2248
    %v2255 = vadd.s32 %v2251, 1
    %v2256 = vsel %vm2254, %v2255, %v2251
    %v2257 = vadd.s32 %v2252, %v2256
    %v2258 = vadd.s32 %v2257, 536870912
    %v2259 = vshrl.u32 %v2258, 30
    %v2260 = vshll.u32 %v2259, 30
    %v2261 = vsub.s32 %v2257, %v2260
    %vm2262 = vcmp.lt.s32.totalorder %v2261, 0
    %v2263 = vsub.s32 0, %v2261
    %v2264 = vsel %vm2262, %v2263, %v2261
    %v2265 = vclz %v2264
    %v2266 = vsub.s32 %v2265, 2
    %vm2267 = vcmp.gt.s32.totalorder 0, %v2266
    %v2268 = vsel %vm2267, 0, %v2266
    %v2269 = vsub.s32 32, %v2268
    %v2270 = vshll.u32 %v2261, %v2268
    %v2271 = vshrl.u32 %v2253, %v2269
    %v2272 = vor.u32 %v2270, %v2271
    %v2273 = vsub.s32 4294967266, %v2268
    %v2274 = vadd.s32 %v2273, 127
    %v2275 = vshll.u32 %v2274, 23
    %v2276 = vor.u32 4788187, %v2275
    %v2277 = vand.u32 2147483647, %v2276
    %v2279 = vcvt.s32.f32 %v2272
    %v2280 = vmul.f32 %v2279, %v2277
    %v2281 = vxor.u32 %v2280, 2147483648
    %v2282 = vsel %vm2161, %v2281, %v2280
    %v2283 = vsub.s32 4, %v2259
    %v2284 = vsel %vm2161, %v2283, %v2259
    %v2285 = vsel %vm2160, %v141, %v2282
    %v2286 = vsel %vm2160, 0, %v2284
    %v2287 = vmul.f32 %v2285, %v2285
    %v2288 = vmul.f32 %v2287, -0.001358992
    %v2289 = vadd.f32 %v2288, 0.041655596
    %v2290 = vmul.f32 %v2287, %v2289
    %v2291 = vadd.f32 %v2290, -0.4999988
    %v2292 = vmul.f32 %v2287, %v2291
    %v2293 = vadd.f32 1.0, %v2292
    %v2294 = vmul.f32 %v2285, %v2285
    %v2295 = vmul.f32 %v2294, -0.00019511016
    %v2296 = vadd.f32 %v2295, 0.008332121
    %v2297 = vmul.f32 %v2294, %v2296
    %v2298 = vadd.f32 %v2297, -0.16666654
    %v2299 = vmul.f32 %v2294, %v2298
    %v2300 = vadd.f32 %v2299, 1.0
    %v2301 = vmul.f32 %v2300, %v2285
    %vm2302 = vweird.f32 %v141
    %v2303 = vadd.s32 %v2286, 3
    %v2304 = vand.u32 %v2303, 3
    %vm2305 = vcmp.lt.s32.totalorder %v2304, 2
    %vm2306 = vcmp.eq.s32.totalorder %v2304, 0
    %v2307 = vxor.u32 %v2301, 2147483648
    %v2308 = vsel %vm2306, %v2293, %v2307
    %vm2309 = vcmp.eq.s32.totalorder %v2304, 2
    %v2310 = vxor.u32 %v2293, 2147483648
    %v2311 = vsel %vm2309, %v2310, %v2301
    %v2312 = vsel %vm2305, %v2308, %v2311
    %v2313 = vsel %vm2302, nan, %v2312
    %v2314 = vand.u32 2147483647, %v142
    %vm2315 = vcmp.le.f32.partialorder %v2314, 0.7853982
    %vm2316 = vcmp.lt.s32.totalorder %v142, 0
    %v2317 = vand.u32 %v142, 2139095040
    %v2318 = vshrl.u32 %v2317, 23
    %v2319 = vsub.s32 %v2318, 127
    %v2320 = vand.u32 2147483647, %v142
    %v2321 = vand.u32 %v2320, 8388607
    %v2322 = vor.u32 %v2321, 8388608
    %v2323 = vsub.s32 0, %v2322
    %v2324 = vadd.s32 %v2319, 1
    %vm2325 = vcmp.gt.s32.totalorder %v2324, 0
    %v2326 = vsel %vm2325, %v2324, 0
    %v2327 = vshrl.u32 %v2326, 5
    %v2328 = vand.u32 %v2326, 31
    %v2329 = vsub.s32 32, %v2328
    %v2330 = vshrl.u32 683565275, %v2329
    %v2331 = vshll.u32 683565275, %v2328
    %v2332 = vshrl.u32 2475754826, %v2329
    %v2333 = vor.u32 %v2331, %v2332
    %v2334 = vshll.u32 2475754826, %v2328
    %v2335 = vshrl.u32 2131351028, %v2329
    %v2336 = vor.u32 %v2334, %v2335
    %v2337 = vshll.u32 2131351028, %v2328
    %v2338 = vshrl.u32 2102212464, %v2329
    %v2339 = vor.u32 %v2337, %v2338
    %v2340 = vshll.u32 2102212464, %v2328
    %v2341 = vshrl.u32 920167782, %v2329
    %v2342 = vor.u32 %v2340, %v2341
    %v2343 = vshll.u32 920167782, %v2328
    %v2344 = vshrl.u32 1326507024, %v2329
    %v2345 = vor.u32 %v2343, %v2344
    %vm2346 = vcmp.lt.s32.totalorder %v2327, 1
    %vm2347 = vcmp.lt.s32.totalorder %v2327, 2
    %vm2348 = vcmp.lt.s32.totalorder %v2327, 3
    %vm2349 = vcmp.lt.s32.totalorder %v2327, 4
    %v2350 = vsel %vm2346, %v2330, %v2333
    %v2351 = vsel %vm2349, %v2339, 2102212464
    %v2352 = vsel %vm2348, %v2336, %v2351
    %v2353 = vsel %vm2347, %v2350, %v2352
    %v2354 = vsel %vm2346, %v2333, %v2336
    %v2355 = vsel %vm2349, %v2342, 920167782
    %v2356 = vsel %vm2348, %v2339, %v2355
    %v2357 = vsel %vm2347, %v2354, %v2356
    %v2358 = vsel %vm2346, %v2336, %v2339
    %v2359 = vsel %vm2349, %v2345, 1326507024
    %v2360 = vsel %vm2348, %v2342, %v2359
    %v2361 = vsel %vm2347, %v2358, %v2360
    %v2362 = vshll.u32 %v2322, 8
    %v2363 = vand.u32 %v2362, 65535
    %v2364 = vshrl.u32 %v2362, 16
    %v2365 = vand.u32 %v2361, 65535
    %v2366 = vshrl.u32 %v2361, 16
    %v2367 = vmul.u32 %v2363, %v2365
    %v2368 = vmul.u32 %v2363, %v2366
    %v2369 = vmul.u32 %v2364, %v2365
    %v2370 = vmul.u32 %v2364, %v2366
    %v2371 = vshll.u32 %v2368, 16
    %v2372 = vshrl.u32 %v2368, 16
    %v2373 = vshll.u32 %v2369, 16
    %v2374 = vshrl.u32 %v2369, 16
    %vm2375 = vc.u32 %v2367, %v2371
    %v2376 = vsel %vm2375, 1, 0
    %v2377 = vadd.s32 %v2367, %v2371
    %v2378 = vadd.s32 %v2370, %v2376
    %vm2379 = vc.u32 %v2377, %v2373
    %v2380 = vsel %vm2379, 1, 0
    %v2381 = vadd.s32 %v2377, %v2373
    %v2382 = vadd.s32 %v2378, %v2380
    %v2383 = vadd.s32 %v2382, %v2372
    %v2384 = vadd.s32 %v2383, %v2374
    %v2385 = vand.u32 %v2362, 65535
    %v2386 = vshrl.u32 %v2362, 16
    %v2387 = vand.u32 %v2357, 65535
    %v2388 = vshrl.u32 %v2357, 16
    %v2389 = vmul.u32 %v2385, %v2387
    %v2390 = vmul.u32 %v2385, %v2388
    %v2391 = vmul.u32 %v2386, %v2387
    %v2392 = vmul.u32 %v2386, %v2388
    %v2393 = vshll.u32 %v2390, 16
    %v2394 = vshrl.u32 %v2390, 16
    %v2395 = vshll.u32 %v2391, 16
    %v2396 = vshrl.u32 %v2391, 16
    %vm2397 = vc.u32 %v2389, %v2393
    %v2398 = vsel %vm2397, 1, 0
    %v2399 = vadd.s32 %v2389, %v2393
    %v2400 = vadd.s32 %v2392, %v2398
    %vm2401 = vc.u32 %v2399, %v2395
    %v2402 = vsel %vm2401, 1, 0
    %v2403 = vadd.s32 %v2399, %v2395
    %v2404 = vadd.s32 %v2400, %v2402
    %v2405 = vadd.s32 %v2404, %v2394
    %v2406 = vadd.s32 %v2405, %v2396
    %v2407 = vmul.u32 %v2362, %v2353
    %v2408 = vadd.s32 %v2384, %v2403
    %vm2409 = vc.u32 %v2384, %v2403
    %v2410 = vadd.s32 %v2406, 1
    %v2411 = vsel %vm2409, %v2410, %v2406
    %v2412 = vadd.s32 %v2407, %v2411
    %v2413 = vadd.s32 %v2412, 536870912
    %v2414 = vshrl.u32 %v2413, 30
    %v2415 = vshll.u32 %v2414, 30
    %v2416 = vsub.s32 %v2412, %v2415
    %vm2417 = vcmp.lt.s32.totalorder %v2416, 0
    %v2418 = vsub.s32 0, %v2416
    %v2419 = vsel %vm2417, %v2418, %v2416
    %v2420 = vclz %v2419
    %v2421 = vsub.s32 %v2420, 2
    %vm2422 = vcmp.gt.s32.totalorder 0, %v2421
    %v2423 = vsel %vm2422, 0, %v2421
    %v2424 = vsub.s32 32, %v2423
    %v2425 = vshll.u32 %v2416, %v2423
    %v2426 = vshrl.u32 %v2408, %v2424
    %v2427 = vor.u32 %v2425, %v2426
    %v2428 = vsub.s32 4294967266, %v2423
    %v2429 = vadd.s32 %v2428, 127
    %v2430 = vshll.u32 %v2429, 23
    %v2431 = vor.u32 4788187, %v2430
    %v2432 = vand.u32 2147483647, %v2431
    %v2434 = vcvt.s32.f32 %v2427
    %v2435 = vmul.f32 %v2434, %v2432
    %v2436 = vxor.u32 %v2435, 2147483648
    %v2437 = vsel %vm2316, %v2436, %v2435
    %v2438 = vsub.s32 4, %v2414
    %v2439 = vsel %vm2316, %v2438, %v2414
    %v2440 = vsel %vm2315, %v142, %v2437
    %v2441 = vsel %vm2315, 0, %v2439
    %v2442 = vmul.f32 %v2440, %v2440
    %v2443 = vmul.f32 %v2442, -0.001358992
    %v2444 = vadd.f32 %v2443, 0.041655596
    %v2445 = vmul.f32 %v2442, %v2444
    %v2446 = vadd.f32 %v2445, -0.4999988
    %v2447 = vmul.f32 %v2442, %v2446
    %v2448 = vadd.f32 1.0, %v2447
    %v2449 = vmul.f32 %v2440, %v2440
    %v2450 = vmul.f32 %v2449, -0.00019511016
    %v2451 = vadd.f32 %v2450, 0.008332121
    %v2452 = vmul.f32 %v2449, %v2451
    %v2453 = vadd.f32 %v2452, -0.16666654
    %v2454 = vmul.f32 %v2449, %v2453
    %v2455 = vadd.f32 %v2454, 1.0
    %v2456 = vmul.f32 %v2455, %v2440
    %vm2457 = vweird.f32 %v142
    %v2458 = vadd.s32 %v2441, 3
    %v2459 = vand.u32 %v2458, 3
    %vm2460 = vcmp.lt.s32.totalorder %v2459, 2
    %vm2461 = vcmp.eq.s32.totalorder %v2459, 0
    %v2462 = vxor.u32 %v2456, 2147483648
    %v2463 = vsel %vm2461, %v2448, %v2462
    %vm2464 = vcmp.eq.s32.totalorder %v2459, 2
    %v2465 = vxor.u32 %v2448, 2147483648
    %v2466 = vsel %vm2464, %v2465, %v2456
    %v2467 = vsel %vm2460, %v2463, %v2466
    %v2468 = vsel %vm2457, nan, %v2467
    %v2469 = vand.u32 2147483647, %v143
    %vm2470 = vcmp.le.f32.partialorder %v2469, 0.7853982
    %vm2471 = vcmp.lt.s32.totalorder %v143, 0
    %v2472 = vand.u32 %v143, 2139095040
    %v2473 = vshrl.u32 %v2472, 23
    %v2474 = vsub.s32 %v2473, 127
    %v2475 = vand.u32 2147483647, %v143
    %v2476 = vand.u32 %v2475, 8388607
    %v2477 = vor.u32 %v2476, 8388608
    %v2478 = vsub.s32 0, %v2477
    %v2479 = vadd.s32 %v2474, 1
    %vm2480 = vcmp.gt.s32.totalorder %v2479, 0
    %v2481 = vsel %vm2480, %v2479, 0
    %v2482 = vshrl.u32 %v2481, 5
    %v2483 = vand.u32 %v2481, 31
    %v2484 = vsub.s32 32, %v2483
    %v2485 = vshrl.u32 683565275, %v2484
    %v2486 = vshll.u32 683565275, %v2483
    %v2487 = vshrl.u32 2475754826, %v2484
    %v2488 = vor.u32 %v2486, %v2487
    %v2489 = vshll.u32 2475754826, %v2483
    %v2490 = vshrl.u32 2131351028, %v2484
    %v2491 = vor.u32 %v2489, %v2490
    %v2492 = vshll.u32 2131351028, %v2483
    %v2493 = vshrl.u32 2102212464, %v2484
    %v2494 = vor.u32 %v2492, %v2493
    %v2495 = vshll.u32 2102212464, %v2483
    %v2496 = vshrl.u32 920167782, %v2484
    %v2497 = vor.u32 %v2495, %v2496
    %v2498 = vshll.u32 920167782, %v2483
    %v2499 = vshrl.u32 1326507024, %v2484
    %v2500 = vor.u32 %v2498, %v2499
    %vm2501 = vcmp.lt.s32.totalorder %v2482, 1
    %vm2502 = vcmp.lt.s32.totalorder %v2482, 2
    %vm2503 = vcmp.lt.s32.totalorder %v2482, 3
    %vm2504 = vcmp.lt.s32.totalorder %v2482, 4
    %v2505 = vsel %vm2501, %v2485, %v2488
    %v2506 = vsel %vm2504, %v2494, 2102212464
    %v2507 = vsel %vm2503, %v2491, %v2506
    %v2508 = vsel %vm2502, %v2505, %v2507
    %v2509 = vsel %vm2501, %v2488, %v2491
    %v2510 = vsel %vm2504, %v2497, 920167782
    %v2511 = vsel %vm2503, %v2494, %v2510
    %v2512 = vsel %vm2502, %v2509, %v2511
    %v2513 = vsel %vm2501, %v2491, %v2494
    %v2514 = vsel %vm2504, %v2500, 1326507024
    %v2515 = vsel %vm2503, %v2497, %v2514
    %v2516 = vsel %vm2502, %v2513, %v2515
    %v2517 = vshll.u32 %v2477, 8
    %v2518 = vand.u32 %v2517, 65535
    %v2519 = vshrl.u32 %v2517, 16
    %v2520 = vand.u32 %v2516, 65535
    %v2521 = vshrl.u32 %v2516, 16
    %v2522 = vmul.u32 %v2518, %v2520
    %v2523 = vmul.u32 %v2518, %v2521
    %v2524 = vmul.u32 %v2519, %v2520
    %v2525 = vmul.u32 %v2519, %v2521
    %v2526 = vshll.u32 %v2523, 16
    %v2527 = vshrl.u32 %v2523, 16
    %v2528 = vshll.u32 %v2524, 16
    %v2529 = vshrl.u32 %v2524, 16
    %vm2530 = vc.u32 %v2522, %v2526
    %v2531 = vsel %vm2530, 1, 0
    %v2532 = vadd.s32 %v2522, %v2526
    %v2533 = vadd.s32 %v2525, %v2531
    %vm2534 = vc.u32 %v2532, %v2528
    %v2535 = vsel %vm2534, 1, 0
    %v2536 = vadd.s32 %v2532, %v2528
    %v2537 = vadd.s32 %v2533, %v2535
    %v2538 = vadd.s32 %v2537, %v2527
    %v2539 = vadd.s32 %v2538, %v2529
    %v2540 = vand.u32 %v2517, 65535
    %v2541 = vshrl.u32 %v2517, 16
    %v2542 = vand.u32 %v2512, 65535
    %v2543 = vshrl.u32 %v2512, 16
    %v2544 = vmul.u32 %v2540, %v2542
    %v2545 = vmul.u32 %v2540, %v2543
    %v2546 = vmul.u32 %v2541, %v2542
    %v2547 = vmul.u32 %v2541, %v2543
    %v2548 = vshll.u32 %v2545, 16
    %v2549 = vshrl.u32 %v2545, 16
    %v2550 = vshll.u32 %v2546, 16
    %v2551 = vshrl.u32 %v2546, 16
    %vm2552 = vc.u32 %v2544, %v2548
    %v2553 = vsel %vm2552, 1, 0
    %v2554 = vadd.s32 %v2544, %v2548
    %v2555 = vadd.s32 %v2547, %v2553
    %vm2556 = vc.u32 %v2554, %v2550
    %v2557 = vsel %vm2556, 1, 0
    %v2558 = vadd.s32 %v2554, %v2550
    %v2559 = vadd.s32 %v2555, %v2557
    %v2560 = vadd.s32 %v2559, %v2549
    %v2561 = vadd.s32 %v2560, %v2551
    %v2562 = vmul.u32 %v2517, %v2508
    %v2563 = vadd.s32 %v2539, %v2558
    %vm2564 = vc.u32 %v2539, %v2558
    %v2565 = vadd.s32 %v2561, 1
    %v2566 = vsel %vm2564, %v2565, %v2561
    %v2567 = vadd.s32 %v2562, %v2566
    %v2568 = vadd.s32 %v2567, 536870912
    %v2569 = vshrl.u32 %v2568, 30
    %v2570 = vshll.u32 %v2569, 30
    %v2571 = vsub.s32 %v2567, %v2570
    %vm2572 = vcmp.lt.s32.totalorder %v2571, 0
    %v2573 = vsub.s32 0, %v2571
    %v2574 = vsel %vm2572, %v2573, %v2571
    %v2575 = vclz %v2574
    %v2576 = vsub.s32 %v2575, 2
    %vm2577 = vcmp.gt.s32.totalorder 0, %v2576
    %v2578 = vsel %vm2577, 0, %v2576
    %v2579 = vsub.s32 32, %v2578
    %v2580 = vshll.u32 %v2571, %v2578
    %v2581 = vshrl.u32 %v2563, %v2579
    %v2582 = vor.u32 %v2580, %v2581
    %v2583 = vsub.s32 4294967266, %v2578
    %v2584 = vadd.s32 %v2583, 127
    %v2585 = vshll.u32 %v2584, 23
    %v2586 = vor.u32 4788187, %v2585
    %v2587 = vand.u32 2147483647, %v2586
    %v2589 = vcvt.s32.f32 %v2582
    %v2590 = vmul.f32 %v2589, %v2587
    %v2591 = vxor.u32 %v2590, 2147483648
    %v2592 = vsel %vm2471, %v2591, %v2590
    %v2593 = vsub.s32 4, %v2569
    %v2594 = vsel %vm2471, %v2593, %v2569
    %v2595 = vsel %vm2470, %v143, %v2592
    %v2596 = vsel %vm2470, 0, %v2594
    %v2597 = vmul.f32 %v2595, %v2595
    %v2598 = vmul.f32 %v2597, -0.001358992
    %v2599 = vadd.f32 %v2598, 0.041655596
    %v2600 = vmul.f32 %v2597, %v2599
    %v2601 = vadd.f32 %v2600, -0.4999988
    %v2602 = vmul.f32 %v2597, %v2601
    %v2603 = vadd.f32 1.0, %v2602
    %v2604 = vmul.f32 %v2595, %v2595
    %v2605 = vmul.f32 %v2604, -0.00019511016
    %v2606 = vadd.f32 %v2605, 0.008332121
    %v2607 = vmul.f32 %v2604, %v2606
    %v2608 = vadd.f32 %v2607, -0.16666654
    %v2609 = vmul.f32 %v2604, %v2608
    %v2610 = vadd.f32 %v2609, 1.0
    %v2611 = vmul.f32 %v2610, %v2595
    %vm2612 = vweird.f32 %v143
    %v2613 = vadd.s32 %v2596, 3
    %v2614 = vand.u32 %v2613, 3
    %vm2615 = vcmp.lt.s32.totalorder %v2614, 2
    %vm2616 = vcmp.eq.s32.totalorder %v2614, 0
    %v2617 = vxor.u32 %v2611, 2147483648
    %v2618 = vsel %vm2616, %v2603, %v2617
    %vm2619 = vcmp.eq.s32.totalorder %v2614, 2
    %v2620 = vxor.u32 %v2603, 2147483648
    %v2621 = vsel %vm2619, %v2620, %v2611
    %v2622 = vsel %vm2615, %v2618, %v2621
    %v2623 = vsel %vm2612, nan, %v2622
    %2624 = vst [vmem:[#allocation2] sm:$0xff] %v298
    %2625 = vst [vmem:[#allocation2 + $0x8] sm:$0xff] %v453
    %2626 = vst [vmem:[#allocation2 + $0x10] sm:$0xff] %v608
    %2627 = vst [vmem:[#allocation2 + $0x18] sm:$0xff] %v763
    %2628 = vst [vmem:[#allocation2 + $0x20] sm:$0xff] %v918
    %2629 = vst [vmem:[#allocation2 + $0x28] sm:$0xff] %v1073
    %2630 = vst [vmem:[#allocation2 + $0x30] sm:$0xff] %v1228
    %2631 = vst [vmem:[#allocation2 + $0x38] sm:$0xff] %v1383
    %2632 = vst [vmem:[#allocation2 + $0x40] sm:$0xff] %v1538
    %2633 = vst [vmem:[#allocation2 + $0x48] sm:$0xff] %v1693
    %2634 = vst [vmem:[#allocation2 + $0x50] sm:$0xff] %v1848
    %2635 = vst [vmem:[#allocation2 + $0x58] sm:$0xff] %v2003
    %2636 = vst [vmem:[#allocation2 + $0x60] sm:$0xff] %v2158
    %2637 = vst [vmem:[#allocation2 + $0x68] sm:$0xff] %v2313
    %2638 = vst [vmem:[#allocation2 + $0x70] sm:$0xff] %v2468
    %2639 = vst [vmem:[#allocation2 + $0x78] sm:$0xff] %v2623
    // Predicated region
    $region10: #{tpu_custom_call.1} parent=1 // pred_check
      _
    $region11: #{tpu_custom_call.1} parent=1 // pred_check_branch
      %2641 = sbr.rel (0) target = $region13
    $region12: #{tpu_custom_call.1} parent=1 // pred_region
      %2643 = vsyncadd [#allocation3], 0
      %s2644 = sshll.u32 [#allocation2], 4
      %s2645 = int_to_ptr.vmem [resolvable:$true] %s2644
      %s2646 = sshll.u32 %s2, 4
      %s2647 = int_to_ptr.hbm [resolvable:$true] %s2646
      %2652 = dma.vmem_to_hbm [thread:$0]  %s2645, 2048, %s2647, [#allocation3], 128, 128, 8
    $region13: #{tpu_custom_call.1} parent=1 // pred_fallthru
      _
    // Predicated region
    $region14: #{tpu_custom_call.1} parent=1 // pred_check
      _
    $region15: #{tpu_custom_call.1} parent=1 // pred_check_branch
      %2654 = sbr.rel (0) target = $region17
    $region16: #{tpu_custom_call.1} parent=1 // pred_region
      %2656 = dma.done [#allocation3], 2048
    $region17: #{tpu_custom_call.1} parent=1 // pred_fallthru
      _
    %2657 = vsyncpa [#allocation3], 1

</llo_original>
